<compile_context>
chip_gen: v6e
topology: v6e:2x2x1
jax: 0.10.0
libtpu: 0.0.40
codegen_flags: <defaults>
</compile_context>

<pallas_src>
import functools
import math

import jax
import jax.numpy as jnp
from jax import lax
from jax.experimental import pallas as pl
from jax.experimental.pallas import tpu as pltpu

_BIG = 1e9  # sentinel distance: folds pair-validity masks into the distances.


def _round_up(v, m):
    return (v + m - 1) // m * m


def _vmem_limit_bytes():
    try:
        cap = pltpu.get_tpu_info().vmem_capacity_bytes
        return int(min(cap * 3 // 4, 100 * 1024 * 1024))
    except Exception:  # interpret mode / older jax: fall back to a safe value.
        return 64 * 1024 * 1024


def _triplet_kernel(x_ref, lcol_ref, lrow_ref, lanc_ref,        # inputs
                    sum_out_ref, cnt_out_ref,                   # outputs
                    dn_ref, dpT_ref, sum_acc_ref, cnt_acc_ref,  # scratch
                    *, margin, n_valid, block_a, block_p, block_n):
    i = pl.program_id(0)
    n_pad = x_ref.shape[0]
    ta, tp, tn = block_a, block_p, block_n
    num_p = n_pad // tp
    num_n = n_pad // tn
    a_start = pl.multiple_of(i * ta, ta)

    # ---------------- per-anchor-block 2D precompute (O(N^2)) ----------------
    xa = x_ref[pl.ds(a_start, ta), :]                     # (TA, D) anchor rows
    x_all = x_ref[...]                                    # (Npad, D) resident

    # Unit-norm rows => d^2 = 2 - 2<x_i, x_j>. Gram on the MXU, sqrt via EUP.
    g = lax.dot_general(xa, x_all, (((1,), (1,)), ((), ())),
                        preferred_element_type=jnp.float32)        # (TA, Npad)
    d2 = jnp.maximum(2.0 - 2.0 * g, 0.0)
    d_row = d2 * lax.rsqrt(jnp.maximum(d2, 1e-24))

    la_col = lcol_ref[pl.ds(a_start, ta), :]              # (TA, 1) anchor labels
    l_row = lrow_ref[...]                                 # (1, Npad) all labels
    a_idx_col = a_start + lax.broadcasted_iota(jnp.int32, (ta, 1), 0)
    j_idx_row = lax.broadcasted_iota(jnp.int32, (1, n_pad), 1)
    valid = jnp.logical_and(a_idx_col < n_valid, j_idx_row < n_valid)
    neg_ok = jnp.logical_and(la_col != l_row, valid)
    # Invalid negative pairs -> -BIG so tm = d_an - d_ap fails `tm > 0`.
    # (Padded rows are explicit zeros, so d_row is always finite.)
    masked_neg = jnp.where(neg_ok, d_row, -_BIG)          # (TA, Npad)
    for jn in range(num_n):                               # static, small unroll
        dn_ref[jn] = masked_neg[:, jn * tn:(jn + 1) * tn]

    # Transposed (all x anchor) distances for the positive side so the inner
    # loop takes 8-row sublane-aligned slices along the p axis.
    gT = lax.dot_general(x_all, xa, (((1,), (1,)), ((), ())),
                         preferred_element_type=jnp.float32)       # (Npad, TA)
    d2T = jnp.maximum(2.0 - 2.0 * gT, 0.0)
    d_colT = d2T * lax.rsqrt(jnp.maximum(d2T, 1e-24))

    l_col = lcol_ref[...]                                 # (Npad, 1)
    la_row = lanc_ref[0]                                  # (1, TA) anchor labels
    p_idx_col = lax.broadcasted_iota(jnp.int32, (n_pad, 1), 0)
    a_idx_row = a_start + lax.broadcasted_iota(jnp.int32, (1, ta), 1)
    validT = jnp.logical_and(p_idx_col < n_valid, a_idx_row < n_valid)
    pos_ok = jnp.logical_and(
        jnp.logical_and(l_col == la_row, p_idx_col != a_idx_row), validT)
    # Invalid positive pairs -> +BIG: also fails `tm > 0`.
    dpT_ref[...] = jnp.where(pos_ok, d_colT, _BIG)        # (Npad, TA)

    sum_acc_ref[...] = jnp.zeros_like(sum_acc_ref)
    cnt_acc_ref[...] = jnp.zeros_like(cnt_acc_ref)

    # -------------- O(N^3) triplet enumeration, tiled (TP, TA, TN) ----------
    def p_body(jp, carry):
        p_off = pl.multiple_of(jp * tp, tp)
        d_ap = dpT_ref[pl.ds(p_off, tp), :]               # (TP, TA)

        def n_body(jn, carry_n):
            d_an = dn_ref[jn]                             # (TA, TN)
            tm = d_an[None, :, :] - d_ap[:, :, None]      # (TP, TA, TN)
            hinge = margin - tm
            # semihard (0 < tm <= margin) AND loss > 0  <=>  0 < tm < margin
            m = jnp.logical_and(tm > 0.0, hinge > 0.0)
            sum_acc_ref[...] += jnp.where(m, hinge, 0.0)
            cnt_acc_ref[...] += jnp.where(m, 1.0, 0.0)
            return carry_n

        lax.fori_loop(0, num_n, n_body, 0)
        return carry

    lax.fori_loop(0, num_p, p_body, 0)

    # One cross-lane reduction per anchor block; partials combined in JAX.
    s = jnp.sum(jnp.sum(sum_acc_ref[...], axis=0))
    c = jnp.sum(jnp.sum(cnt_acc_ref[...], axis=0))
    ones = jnp.ones((1, 1, 128), jnp.float32)
    sum_out_ref[...] = s * ones
    cnt_out_ref[...] = c * ones


def triplet_loss(embeddings, labels, margin=0.1, *,
                 block_a=128, block_p=8, block_n=512):
    n, d_dim = embeddings.shape

    # Hoisted L2 normalization (LpDistance normalize_embeddings=True).
    x = embeddings.astype(jnp.float32)
    x = x / jnp.maximum(jnp.sqrt(jnp.sum(x * x, axis=-1, keepdims=True)), 1e-12)

    # Tile sizes (clamped for small N, kept (8,128)-friendly).
    ta = max(8, min(_round_up(block_a, 8), _round_up(n, 8)))
    tn = max(128, min(_round_up(block_n, 128), _round_up(n, 128)))
    tp = max(8, min(_round_up(block_p, 8), ta))
    grid0 = -(-n // ta)
    n_pad = _round_up(grid0 * ta, math.lcm(tn, tp))
    a_total = grid0 * ta

    pad = n_pad - n
    x_pad = jnp.pad(x, ((0, pad), (0, 0)))                # padded rows are zeros
    lab = labels.reshape(-1).astype(jnp.int32)
    lab_pad = jnp.pad(lab, (0, pad), constant_values=-1)
    lab_col = lab_pad.reshape(n_pad, 1)
    lab_row = lab_pad.reshape(1, n_pad)
    lab_anchor = jnp.pad(lab, (0, a_total - n),
                         constant_values=-1).reshape(grid0, 1, ta)

    kernel = functools.partial(
        _triplet_kernel, margin=float(margin), n_valid=n,
        block_a=ta, block_p=tp, block_n=tn)

    grid_spec = pltpu.PrefetchScalarGridSpec(
        num_scalar_prefetch=0,
        grid=(grid0,),
        in_specs=[
            pl.BlockSpec((n_pad, d_dim), lambda i: (0, 0)),  # embeddings (resident)
            pl.BlockSpec((n_pad, 1), lambda i: (0, 0)),      # labels as a column
            pl.BlockSpec((1, n_pad), lambda i: (0, 0)),      # labels as a row
            pl.BlockSpec((1, 1, ta), lambda i: (i, 0, 0)),   # anchor labels (row)
        ],
        out_specs=[
            pl.BlockSpec((1, 1, 128), lambda i: (i, 0, 0)),  # per-block loss sum
            pl.BlockSpec((1, 1, 128), lambda i: (i, 0, 0)),  # per-block count
        ],
        scratch_shapes=[
            pltpu.VMEM((n_pad // tn, ta, tn), jnp.float32),  # neg-masked d
            pltpu.VMEM((n_pad, ta), jnp.float32),            # pos-masked d (T)
            pltpu.VMEM((tp, ta, tn), jnp.float32),           # loss accumulator
            pltpu.VMEM((tp, ta, tn), jnp.float32),           # count accumulator
        ],
    )

    sums, cnts = pl.pallas_call(
        kernel,
        out_shape=(jax.ShapeDtypeStruct((grid0, 1, 128), jnp.float32),
                   jax.ShapeDtypeStruct((grid0, 1, 128), jnp.float32)),
        grid_spec=grid_spec,
        compiler_params=pltpu.CompilerParams(
            dimension_semantics=("parallel",),
            vmem_limit_bytes=_vmem_limit_bytes()),
        cost_estimate=pl.CostEstimate(
            flops=int(4 * a_total * n_pad * d_dim + 9 * a_total * n_pad * n_pad),
            transcendentals=int(2 * a_total * n_pad),
            bytes_accessed=int(4 * (grid0 * n_pad * d_dim + 4 * n_pad
                                    + 256 * grid0))),
    )(x_pad, lab_col, lab_row, lab_anchor)

    total = jnp.sum(sums[:, 0, 0])
    count = jnp.sum(cnts[:, 0, 0])
    # AvgNonZeroReducer: mean over strictly-positive losses, 0 if none.
    return jnp.where(count > 0.0, total / jnp.maximum(count, 1.0), 0.0)


def triplet_loss_ref(embeddings, labels, margin=0.1):
    """Pure-JAX reference mirroring TripletMarginMiner('semihard') + TripletMarginLoss."""
    x = embeddings.astype(jnp.float32)
    x = x / jnp.maximum(jnp.linalg.norm(x, axis=-1, keepdims=True), 1e-12)
    diff = x[:, None, :] - x[None, :, :]
    d = jnp.sqrt(jnp.maximum(jnp.sum(diff * diff, axis=-1), 0.0))
    n = x.shape[0]
    same = labels[:, None] == labels[None, :]
    eye = jnp.eye(n, dtype=bool)
    pos_mask = same & ~eye                       # (a, p)
    neg_mask = ~same                             # (a, n)
    tm = d[:, None, :] - d[:, :, None]           # d_an - d_ap, shape (a, p, n)
    semihard = (tm > 0.0) & (tm <= margin)
    mask = pos_mask[:, :, None] & neg_mask[:, None, :] & semihard
    vals = jnp.where(mask, jnp.maximum(margin - tm, 0.0), 0.0)
    cnt = jnp.sum(vals > 0.0)
    return jnp.where(cnt > 0, jnp.sum(vals) / jnp.maximum(cnt, 1), 0.0)


if __name__ == "__main__":
    key = jax.random.PRNGKey(0)
    k_emb, k_lab = jax.random.split(key)

    N, D = 16, 32
    embeddings = jax.random.normal(k_emb, (N, D), dtype=jnp.float32)
    labels = jax.random.randint(k_lab, (N,), 0, 3, dtype=jnp.int32)

    loss = triplet_loss(embeddings, labels, margin=0.1)
    loss = jax.block_until_ready(loss)

    ref = triplet_loss_ref(embeddings, labels, margin=0.1)
    # Gram-formula vs diff-formula distances can flip an epsilon-boundary
    # semihard triplet; impact on the mean is ~1e-4.
    assert jnp.allclose(loss, ref, atol=1e-3, rtol=1e-3), (loss, ref)

    print("KERNEL_OK")
</pallas_src>

<mosaic_0001>
module attributes {stable_mosaic.version = 11 : i64} {
  func.func @_triplet_kernel(%arg0: i32, %arg1: memref<128x32xf32, #tpu.memory_space<vmem>>, %arg2: memref<128x1xi32, #tpu.memory_space<vmem>>, %arg3: memref<1x128xi32, #tpu.memory_space<vmem>>, %arg4: memref<1x1x16xi32, #tpu.memory_space<vmem>>, %arg5: memref<1x1x128xf32, #tpu.memory_space<vmem>>, %arg6: memref<1x1x128xf32, #tpu.memory_space<vmem>>, %arg7: memref<1x16x128xf32, #tpu.memory_space<vmem>>, %arg8: memref<128x16xf32, #tpu.memory_space<vmem>>, %arg9: memref<8x16x128xf32, #tpu.memory_space<vmem>>, %arg10: memref<8x16x128xf32, #tpu.memory_space<vmem>>) attributes {dimension_semantics = [#tpu.dimension_semantics<parallel>], iteration_bounds = array<i64: 1>, scalar_prefetch = 0 : i64, scratch_operands = 4 : i64, tpu.core_type = #tpu.core_type<tc>, window_params = [{pipeline_mode = #tpu.pipeline_mode<synchronous>, transform_indices = @transform_0, window_bounds = array<i64: 128, 32>}, {pipeline_mode = #tpu.pipeline_mode<synchronous>, transform_indices = @transform_1, window_bounds = array<i64: 128, 1>}, {pipeline_mode = #tpu.pipeline_mode<synchronous>, transform_indices = @transform_2, window_bounds = array<i64: 1, 128>}, {transform_indices = @transform_3, window_bounds = array<i64: 1, 1, 16>}, {transform_indices = @transform_4, window_bounds = array<i64: 1, 1, 128>}, {transform_indices = @transform_5, window_bounds = array<i64: 1, 1, 128>}]} {
    %c16_i32 = arith.constant 16 : i32
    %0 = arith.muli %arg0, %c16_i32 : i32
    %1 = tpu.assume_multiple %0, 16 : i32
    %2 = arith.index_cast %1 : i32 to index
    %c0 = arith.constant 0 : index
    %3 = vector.load %arg1[%2, %c0] : memref<128x32xf32, #tpu.memory_space<vmem>>, vector<16x32xf32>
    %c0_0 = arith.constant 0 : index
    %c0_1 = arith.constant 0 : index
    %4 = vector.load %arg1[%c0_0, %c0_1] : memref<128x32xf32, #tpu.memory_space<vmem>>, vector<128x32xf32>
    %cst = arith.constant dense<0.000000e+00> : vector<16x128xf32>
    %5 = tpu.matmul %3, %4, %cst {dimension_numbers = #tpu.dot_dimension_numbers<[1], [1], [0], [0], [0, 0, 1, 0], [], []>} : vector<16x32xf32>, vector<128x32xf32>, vector<16x128xf32> -> vector<16x128xf32>
    %cst_2 = arith.constant 2.000000e+00 : f32
    %6 = vector.broadcast %cst_2 : f32 to vector<16x128xf32>
    %7 = arith.mulf %6, %5 : vector<16x128xf32>
    %cst_3 = arith.constant 2.000000e+00 : f32
    %8 = vector.broadcast %cst_3 : f32 to vector<16x128xf32>
    %9 = arith.subf %8, %7 : vector<16x128xf32>
    %cst_4 = arith.constant 0.000000e+00 : f32
    %10 = vector.broadcast %cst_4 : f32 to vector<16x128xf32>
    %11 = arith.maximumf %9, %10 : vector<16x128xf32>
    %cst_5 = arith.constant 1.000000e-24 : f32
    %12 = vector.broadcast %cst_5 : f32 to vector<16x128xf32>
    %13 = arith.maximumf %11, %12 : vector<16x128xf32>
    %14 = math.rsqrt %13 : vector<16x128xf32>
    %15 = arith.mulf %11, %14 : vector<16x128xf32>
    %16 = arith.index_cast %1 : i32 to index
    %c0_6 = arith.constant 0 : index
    %17 = vector.load %arg2[%16, %c0_6] : memref<128x1xi32, #tpu.memory_space<vmem>>, vector<16x1xi32>
    %c0_7 = arith.constant 0 : index
    %c0_8 = arith.constant 0 : index
    %18 = vector.load %arg3[%c0_7, %c0_8] : memref<1x128xi32, #tpu.memory_space<vmem>>, vector<1x128xi32>
    %19 = tpu.iota {dimensions = array<i32: 0>} : vector<16x1xi32>
    %20 = vector.broadcast %1 : i32 to vector<16x1xi32>
    %21 = arith.addi %20, %19 : vector<16x1xi32>
    %22 = tpu.iota {dimensions = array<i32: 1>} : vector<1x128xi32>
    %c16_i32_9 = arith.constant 16 : i32
    %23 = vector.broadcast %c16_i32_9 : i32 to vector<16x1xi32>
    %24 = arith.cmpi slt, %21, %23 : vector<16x1xi32>
    %c16_i32_10 = arith.constant 16 : i32
    %25 = vector.broadcast %c16_i32_10 : i32 to vector<1x128xi32>
    %26 = arith.cmpi slt, %22, %25 : vector<1x128xi32>
    %27 = vector.broadcast %24 : vector<16x1xi1> to vector<16x128xi1>
    %28 = vector.broadcast %26 : vector<1x128xi1> to vector<16x128xi1>
    %29 = arith.andi %27, %28 : vector<16x128xi1>
    %30 = vector.broadcast %17 : vector<16x1xi32> to vector<16x128xi32>
    %31 = vector.broadcast %18 : vector<1x128xi32> to vector<16x128xi32>
    %32 = arith.cmpi ne, %30, %31 : vector<16x128xi32>
    %33 = arith.andi %32, %29 : vector<16x128xi1>
    %cst_11 = arith.constant -1.000000e+09 : f32
    %34 = vector.broadcast %cst_11 : f32 to vector<16x128xf32>
    %35 = arith.select %33, %15, %34 : vector<16x128xi1>, vector<16x128xf32>
    %c0_12 = arith.constant 0 : index
    %c0_13 = arith.constant 0 : index
    %c0_14 = arith.constant 0 : index
    %36 = vector.load %arg7[%c0_12, %c0_13, %c0_14] : memref<1x16x128xf32, #tpu.memory_space<vmem>>, vector<1x16x128xf32>
    %37 = vector.shape_cast %36 : vector<1x16x128xf32> to vector<16x128xf32>
    %38 = vector.shape_cast %35 : vector<16x128xf32> to vector<1x16x128xf32>
    tpu.vector_store %arg7[%c0_12, %c0_13, %c0_14], %38 {strides = array<i32>} : memref<1x16x128xf32, #tpu.memory_space<vmem>>, vector<1x16x128xf32>,
    %cst_15 = arith.constant dense<0.000000e+00> : vector<128x16xf32>
    %39 = tpu.matmul %4, %3, %cst_15 {dimension_numbers = #tpu.dot_dimension_numbers<[1], [1], [0], [0], [0, 0, 1, 0], [], []>} : vector<128x32xf32>, vector<16x32xf32>, vector<128x16xf32> -> vector<128x16xf32>
    %cst_16 = arith.constant 2.000000e+00 : f32
    %40 = vector.broadcast %cst_16 : f32 to vector<128x16xf32>
    %41 = arith.mulf %40, %39 : vector<128x16xf32>
    %cst_17 = arith.constant 2.000000e+00 : f32
    %42 = vector.broadcast %cst_17 : f32 to vector<128x16xf32>
    %43 = arith.subf %42, %41 : vector<128x16xf32>
    %cst_18 = arith.constant 0.000000e+00 : f32
    %44 = vector.broadcast %cst_18 : f32 to vector<128x16xf32>
    %45 = arith.maximumf %43, %44 : vector<128x16xf32>
    %cst_19 = arith.constant 1.000000e-24 : f32
    %46 = vector.broadcast %cst_19 : f32 to vector<128x16xf32>
    %47 = arith.maximumf %45, %46 : vector<128x16xf32>
    %48 = math.rsqrt %47 : vector<128x16xf32>
    %49 = arith.mulf %45, %48 : vector<128x16xf32>
    %c0_20 = arith.constant 0 : index
    %c0_21 = arith.constant 0 : index
    %50 = vector.load %arg2[%c0_20, %c0_21] : memref<128x1xi32, #tpu.memory_space<vmem>>, vector<128x1xi32>
    %c0_22 = arith.constant 0 : index
    %c0_23 = arith.constant 0 : index
    %c0_24 = arith.constant 0 : index
    %51 = vector.load %arg4[%c0_22, %c0_23, %c0_24] : memref<1x1x16xi32, #tpu.memory_space<vmem>>, vector<1x1x16xi32>
    %52 = vector.shape_cast %51 : vector<1x1x16xi32> to vector<1x16xi32>
    %53 = tpu.iota {dimensions = array<i32: 0>} : vector<128x1xi32>
    %54 = tpu.iota {dimensions = array<i32: 1>} : vector<1x16xi32>
    %55 = vector.broadcast %1 : i32 to vector<1x16xi32>
    %56 = arith.addi %55, %54 : vector<1x16xi32>
    %c16_i32_25 = arith.constant 16 : i32
    %57 = vector.broadcast %c16_i32_25 : i32 to vector<128x1xi32>
    %58 = arith.cmpi slt, %53, %57 : vector<128x1xi32>
    %c16_i32_26 = arith.constant 16 : i32
    %59 = vector.broadcast %c16_i32_26 : i32 to vector<1x16xi32>
    %60 = arith.cmpi slt, %56, %59 : vector<1x16xi32>
    %61 = vector.broadcast %58 : vector<128x1xi1> to vector<128x16xi1>
    %62 = vector.broadcast %60 : vector<1x16xi1> to vector<128x16xi1>
    %63 = arith.andi %61, %62 : vector<128x16xi1>
    %64 = vector.broadcast %50 : vector<128x1xi32> to vector<128x16xi32>
    %65 = vector.broadcast %52 : vector<1x16xi32> to vector<128x16xi32>
    %66 = arith.cmpi eq, %64, %65 : vector<128x16xi32>
    %67 = vector.broadcast %53 : vector<128x1xi32> to vector<128x16xi32>
    %68 = vector.broadcast %56 : vector<1x16xi32> to vector<128x16xi32>
    %69 = arith.cmpi ne, %67, %68 : vector<128x16xi32>
    %70 = arith.andi %66, %69 : vector<128x16xi1>
    %71 = arith.andi %70, %63 : vector<128x16xi1>
    %cst_27 = arith.constant 1.000000e+09 : f32
    %72 = vector.broadcast %cst_27 : f32 to vector<128x16xf32>
    %73 = arith.select %71, %49, %72 : vector<128x16xi1>, vector<128x16xf32>
    %c0_28 = arith.constant 0 : index
    %c0_29 = arith.constant 0 : index
    %74 = vector.load %arg8[%c0_28, %c0_29] : memref<128x16xf32, #tpu.memory_space<vmem>>, vector<128x16xf32>
    tpu.vector_store %arg8[%c0_28, %c0_29], %73 {strides = array<i32>} : memref<128x16xf32, #tpu.memory_space<vmem>>, vector<128x16xf32>,
    %cst_30 = arith.constant 0.000000e+00 : f32
    %75 = vector.broadcast %cst_30 : f32 to vector<8x16x128xf32>
    %c0_31 = arith.constant 0 : index
    %c0_32 = arith.constant 0 : index
    %c0_33 = arith.constant 0 : index
    %76 = vector.load %arg9[%c0_31, %c0_32, %c0_33] : memref<8x16x128xf32, #tpu.memory_space<vmem>>, vector<8x16x128xf32>
    tpu.vector_store %arg9[%c0_31, %c0_32, %c0_33], %75 {strides = array<i32>} : memref<8x16x128xf32, #tpu.memory_space<vmem>>, vector<8x16x128xf32>,
    %cst_34 = arith.constant 0.000000e+00 : f32
    %77 = vector.broadcast %cst_34 : f32 to vector<8x16x128xf32>
    %c0_35 = arith.constant 0 : index
    %c0_36 = arith.constant 0 : index
    %c0_37 = arith.constant 0 : index
    %78 = vector.load %arg10[%c0_35, %c0_36, %c0_37] : memref<8x16x128xf32, #tpu.memory_space<vmem>>, vector<8x16x128xf32>
    tpu.vector_store %arg10[%c0_35, %c0_36, %c0_37], %77 {strides = array<i32>} : memref<8x16x128xf32, #tpu.memory_space<vmem>>, vector<8x16x128xf32>,
    %c0_i32 = arith.constant 0 : i32
    %c16_i32_38 = arith.constant 16 : i32
    %79 = arith.addi %c0_i32, %c16_i32_38 : i32
    %c1_i32 = arith.constant 1 : i32
    scf.for %arg11 = %c0_i32 to %79 step %c1_i32  : i32 {
      %c8_i32 = arith.constant 8 : i32
      %99 = arith.muli %arg11, %c8_i32 : i32
      %100 = tpu.assume_multiple %99, 8 : i32
      %101 = arith.index_cast %100 : i32 to index
      %c0_57 = arith.constant 0 : index
      %102 = vector.load %arg8[%101, %c0_57] : memref<128x16xf32, #tpu.memory_space<vmem>>, vector<8x16xf32>
      %c0_i32_58 = arith.constant 0 : i32
      %103 = arith.index_cast %c0_i32_58 : i32 to index
      %c0_59 = arith.constant 0 : index
      %c0_60 = arith.constant 0 : index
      %104 = vector.load %arg7[%103, %c0_59, %c0_60] : memref<1x16x128xf32, #tpu.memory_space<vmem>>, vector<1x16x128xf32>
      %105 = vector.shape_cast %104 : vector<1x16x128xf32> to vector<16x128xf32>
      %106 = vector.shape_cast %105 : vector<16x128xf32> to vector<1x16x128xf32>
      %107 = vector.shape_cast %102 : vector<8x16xf32> to vector<8x16x1xf32>
      %108 = vector.broadcast %106 : vector<1x16x128xf32> to vector<8x16x128xf32>
      %109 = vector.broadcast %107 : vector<8x16x1xf32> to vector<8x16x128xf32>
      %110 = arith.subf %108, %109 : vector<8x16x128xf32>
      %cst_61 = arith.constant 1.000000e-01 : f32
      %111 = vector.broadcast %cst_61 : f32 to vector<8x16x128xf32>
      %112 = arith.subf %111, %110 : vector<8x16x128xf32>
      %cst_62 = arith.constant 0.000000e+00 : f32
      %113 = vector.broadcast %cst_62 : f32 to vector<8x16x128xf32>
      %114 = arith.cmpf ogt, %110, %113 : vector<8x16x128xf32>
      %cst_63 = arith.constant 0.000000e+00 : f32
      %115 = vector.broadcast %cst_63 : f32 to vector<8x16x128xf32>
      %116 = arith.cmpf ogt, %112, %115 : vector<8x16x128xf32>
      %117 = arith.andi %114, %116 : vector<8x16x128xi1>
      %c0_64 = arith.constant 0 : index
      %c0_65 = arith.constant 0 : index
      %c0_66 = arith.constant 0 : index
      %118 = vector.load %arg9[%c0_64, %c0_65, %c0_66] : memref<8x16x128xf32, #tpu.memory_space<vmem>>, vector<8x16x128xf32>
      %cst_67 = arith.constant 0.000000e+00 : f32
      %119 = vector.broadcast %cst_67 : f32 to vector<8x16x128xf32>
      %120 = arith.select %117, %112, %119 : vector<8x16x128xi1>, vector<8x16x128xf32>
      %121 = arith.addf %118, %120 : vector<8x16x128xf32>
      %c0_68 = arith.constant 0 : index
      %c0_69 = arith.constant 0 : index
      %c0_70 = arith.constant 0 : index
      %122 = vector.load %arg9[%c0_68, %c0_69, %c0_70] : memref<8x16x128xf32, #tpu.memory_space<vmem>>, vector<8x16x128xf32>
      tpu.vector_store %arg9[%c0_68, %c0_69, %c0_70], %121 {strides = array<i32>} : memref<8x16x128xf32, #tpu.memory_space<vmem>>, vector<8x16x128xf32>,
      %c0_71 = arith.constant 0 : index
      %c0_72 = arith.constant 0 : index
      %c0_73 = arith.constant 0 : index
      %123 = vector.load %arg10[%c0_71, %c0_72, %c0_73] : memref<8x16x128xf32, #tpu.memory_space<vmem>>, vector<8x16x128xf32>
      %cst_74 = arith.constant 1.000000e+00 : f32
      %cst_75 = arith.constant 0.000000e+00 : f32
      %124 = vector.broadcast %cst_74 : f32 to vector<8x16x128xf32>
      %125 = vector.broadcast %cst_75 : f32 to vector<8x16x128xf32>
      %126 = arith.select %117, %124, %125 : vector<8x16x128xi1>, vector<8x16x128xf32>
      %127 = arith.addf %123, %126 : vector<8x16x128xf32>
      %c0_76 = arith.constant 0 : index
      %c0_77 = arith.constant 0 : index
      %c0_78 = arith.constant 0 : index
      %128 = vector.load %arg10[%c0_76, %c0_77, %c0_78] : memref<8x16x128xf32, #tpu.memory_space<vmem>>, vector<8x16x128xf32>
      tpu.vector_store %arg10[%c0_76, %c0_77, %c0_78], %127 {strides = array<i32>} : memref<8x16x128xf32, #tpu.memory_space<vmem>>, vector<8x16x128xf32>,
      %c1_i32_79 = arith.constant 1 : i32
    }
    %c16_i32_39 = arith.constant 16 : i32
    %c0_40 = arith.constant 0 : index
    %c0_41 = arith.constant 0 : index
    %c0_42 = arith.constant 0 : index
    %80 = vector.load %arg9[%c0_40, %c0_41, %c0_42] : memref<8x16x128xf32, #tpu.memory_space<vmem>>, vector<8x16x128xf32>
    %cst_43 = arith.constant dense<0.000000e+00> : vector<16x128xf32>
    %81 = vector.multi_reduction <add>, %80, %cst_43 [0] : vector<8x16x128xf32> to vector<16x128xf32>
    %82 = vector.shape_cast %81 : vector<16x128xf32> to vector<1x16x128xf32>
    %cst_44 = arith.constant dense<0.000000e+00> : vector<1xf32>
    %83 = vector.multi_reduction <add>, %82, %cst_44 [1, 2] : vector<1x16x128xf32> to vector<1xf32>
    %84 = vector.shape_cast %83 : vector<1xf32> to vector<1x1x1xf32>
    %85 = vector.extract %84[0, 0, 0] : f32 from vector<1x1x1xf32>
    %c0_45 = arith.constant 0 : index
    %c0_46 = arith.constant 0 : index
    %c0_47 = arith.constant 0 : index
    %86 = vector.load %arg10[%c0_45, %c0_46, %c0_47] : memref<8x16x128xf32, #tpu.memory_space<vmem>>, vector<8x16x128xf32>
    %cst_48 = arith.constant dense<0.000000e+00> : vector<16x128xf32>
    %87 = vector.multi_reduction <add>, %86, %cst_48 [0] : vector<8x16x128xf32> to vector<16x128xf32>
    %88 = vector.shape_cast %87 : vector<16x128xf32> to vector<1x16x128xf32>
    %cst_49 = arith.constant dense<0.000000e+00> : vector<1xf32>
    %89 = vector.multi_reduction <add>, %88, %cst_49 [1, 2] : vector<1x16x128xf32> to vector<1xf32>
    %90 = vector.shape_cast %89 : vector<1xf32> to vector<1x1x1xf32>
    %91 = vector.extract %90[0, 0, 0] : f32 from vector<1x1x1xf32>
    %cst_50 = arith.constant 1.000000e+00 : f32
    %92 = vector.broadcast %cst_50 : f32 to vector<1x1x128xf32>
    %93 = vector.broadcast %85 : f32 to vector<1x1x128xf32>
    %94 = arith.mulf %93, %92 : vector<1x1x128xf32>
    %c0_51 = arith.constant 0 : index
    %c0_52 = arith.constant 0 : index
    %c0_53 = arith.constant 0 : index
    %95 = vector.load %arg5[%c0_51, %c0_52, %c0_53] : memref<1x1x128xf32, #tpu.memory_space<vmem>>, vector<1x1x128xf32>
    tpu.vector_store %arg5[%c0_51, %c0_52, %c0_53], %94 {strides = array<i32>} : memref<1x1x128xf32, #tpu.memory_space<vmem>>, vector<1x1x128xf32>,
    %96 = vector.broadcast %91 : f32 to vector<1x1x128xf32>
    %97 = arith.mulf %96, %92 : vector<1x1x128xf32>
    %c0_54 = arith.constant 0 : index
    %c0_55 = arith.constant 0 : index
    %c0_56 = arith.constant 0 : index
    %98 = vector.load %arg6[%c0_54, %c0_55, %c0_56] : memref<1x1x128xf32, #tpu.memory_space<vmem>>, vector<1x1x128xf32>
    tpu.vector_store %arg6[%c0_54, %c0_55, %c0_56], %97 {strides = array<i32>} : memref<1x1x128xf32, #tpu.memory_space<vmem>>, vector<1x1x128xf32>,
    return
  }
  func.func @transform_0(%arg0: i32) -> (i32, i32) {
    %c0_i32 = arith.constant 0 : i32
    %c0_i32_0 = arith.constant 0 : i32
    %c0_i32_1 = arith.constant 0 : i32
    return %c0_i32, %c0_i32_0 : i32, i32
  }
  func.func @transform_1(%arg0: i32) -> (i32, i32) {
    %c0_i32 = arith.constant 0 : i32
    %c0_i32_0 = arith.constant 0 : i32
    %c0_i32_1 = arith.constant 0 : i32
    return %c0_i32, %c0_i32_0 : i32, i32
  }
  func.func @transform_2(%arg0: i32) -> (i32, i32) {
    %c0_i32 = arith.constant 0 : i32
    %c0_i32_0 = arith.constant 0 : i32
    %c0_i32_1 = arith.constant 0 : i32
    return %c0_i32, %c0_i32_0 : i32, i32
  }
  func.func @transform_3(%arg0: i32) -> (i32, i32, i32) {
    %c0_i32 = arith.constant 0 : i32
    %c0_i32_0 = arith.constant 0 : i32
    %c0_i32_1 = arith.constant 0 : i32
    return %arg0, %c0_i32, %c0_i32_0 : i32, i32, i32
  }
  func.func @transform_4(%arg0: i32) -> (i32, i32, i32) {
    %c0_i32 = arith.constant 0 : i32
    %c0_i32_0 = arith.constant 0 : i32
    %c0_i32_1 = arith.constant 0 : i32
    return %arg0, %c0_i32, %c0_i32_0 : i32, i32, i32
  }
  func.func @transform_5(%arg0: i32) -> (i32, i32, i32) {
    %c0_i32 = arith.constant 0 : i32
    %c0_i32_0 = arith.constant 0 : i32
    %c0_i32_1 = arith.constant 0 : i32
    return %arg0, %c0_i32, %c0_i32_0 : i32, i32, i32
  }
}

</mosaic_0001>

<llo_original>
// kernel: tpu_custom_call.1
$region0: #{tpu_custom_call.1}
  #allocation0 [shape = 'u32[]', space=smem, size = 0x4, offset = 0x4, fixed_abs, tag = 'smem constant byte address 0x4 - core index']
  #allocation1 [shape = 'u32[144,128]{1,0:T(1,128)}', space=vmem, size = 0x12000, scoped, tag = 'internal scratch']
  #allocation2 [shape = 'f32[1,16,128]{2,1,0:T(8,128)}', space=vmem, size = 0x2000, scoped, tag = 'scratch operand']
  #allocation3 [shape = 'f32[128,16]{1,0:T(8,128)}', space=vmem, size = 0x10000, scoped, tag = 'scratch operand']
  #allocation4 [shape = 'f32[8,16,128]{2,1,0:T(8,128)}', space=vmem, size = 0x10000, scoped, tag = 'scratch operand']
  #allocation5 [shape = 'f32[8,16,128]{2,1,0:T(8,128)}', space=vmem, size = 0x10000, scoped, tag = 'scratch operand']
  %s0 = inlined_call_operand.vmem [shape: f32[128,32], index: 0, kind: input, shape index: {}]
  %s1 = inlined_call_operand.vmem [shape: s32[128,1], index: 1, kind: input, shape index: {}]
  %s2 = inlined_call_operand.vmem [shape: s32[1,128], index: 2, kind: input, shape index: {}]
  %s3 = inlined_call_operand.vmem [shape: s32[1,1,16], index: 3, kind: input, shape index: {}]
  %s4 = inlined_call_operand.hbm [shape: f32[1,1,128], index: 4, kind: output, shape index: {0}]
  %s5 = inlined_call_operand.hbm [shape: f32[1,1,128], index: 5, kind: output, shape index: {1}]
  %6 = xla_tuple %s4, %s5
  %s7 = sld [smem:[#allocation0]]
  $region41: #{tpu_custom_call.1} parent=0
    _
  %s9 = ssub.s32 1, %s7
  %s10 = scalar_select 0, %s9, %s7
  $region1: #{tpu_custom_call.1} parent=0
    #allocation6 [shape = 'u8[512]{0}', space=vmem, size = 0x400, scoped, tag = 'output window, operand 0, single buffered']
    #allocation7 [shape = 's32[1]{0}', space=sflag, size = 0x4, scoped, tag = 'scoped memory for tpu_custom_call.1']
    #allocation8 [shape = 'u8[512]{0}', space=vmem, size = 0x400, scoped, tag = 'output window, operand 1, single buffered']
    #allocation9 [shape = 's32[1]{0}', space=sflag, size = 0x4, scoped, tag = 'scoped memory for tpu_custom_call.1']
    %11 = vsyncpa [#allocation7], 0
    %12 = vsyncpa [#allocation9], 0
    // Predicated region
    $region2: #{tpu_custom_call.1} parent=1 // pred_check
      _
    $region3: #{tpu_custom_call.1} parent=1 // pred_check_branch
      %14 = sbr.rel (0) target = $region5
    $region4: #{tpu_custom_call.1} parent=1 // pred_region
      _
    $region5: #{tpu_custom_call.1} parent=1 // pred_fallthru
      _
    // Predicated region
    $region6: #{tpu_custom_call.1} parent=1 // pred_check
      _
    $region7: #{tpu_custom_call.1} parent=1 // pred_check_branch
      %16 = sbr.rel (0) target = $region9
    $region8: #{tpu_custom_call.1} parent=1 // pred_region
      _
    $region9: #{tpu_custom_call.1} parent=1 // pred_fallthru
      _
    // Predicated region
    $region10: #{tpu_custom_call.1} parent=1 // pred_check
      _
    $region11: #{tpu_custom_call.1} parent=1 // pred_check_branch
      %18 = sbr.rel (0) target = $region13
    $region12: #{tpu_custom_call.1} parent=1 // pred_region
      _
    $region13: #{tpu_custom_call.1} parent=1 // pred_fallthru
      _
    // Predicated region
    $region14: #{tpu_custom_call.1} parent=1 // pred_check
      _
    $region15: #{tpu_custom_call.1} parent=1 // pred_check_branch
      %20 = sbr.rel (0) target = $region17
    $region16: #{tpu_custom_call.1} parent=1 // pred_region
      _
    $region17: #{tpu_custom_call.1} parent=1 // pred_fallthru
      _
    %s21 = smul.u32 0, 16
    %s22 = scalar_lea.vmem %s0, %s21
    %v23 = vld [vmem:[%s22] sm:$0xff]
    %v24 = vld [vmem:[%s22 + $0x8] sm:$0xff]
    %v25 = vld [vmem:[%s0] sm:$0xff]
    %v26 = vld [vmem:[%s0 + $0x8] sm:$0xff]
    %v27 = vld [vmem:[%s0 + $0x10] sm:$0xff]
    %v28 = vld [vmem:[%s0 + $0x18] sm:$0xff]
    %v29 = vld [vmem:[%s0 + $0x20] sm:$0xff]
    %v30 = vld [vmem:[%s0 + $0x28] sm:$0xff]
    %v31 = vld [vmem:[%s0 + $0x30] sm:$0xff]
    %v32 = vld [vmem:[%s0 + $0x38] sm:$0xff]
    %v33 = vld [vmem:[%s0 + $0x40] sm:$0xff]
    %v34 = vld [vmem:[%s0 + $0x48] sm:$0xff]
    %v35 = vld [vmem:[%s0 + $0x50] sm:$0xff]
    %v36 = vld [vmem:[%s0 + $0x58] sm:$0xff]
    %v37 = vld [vmem:[%s0 + $0x60] sm:$0xff]
    %v38 = vld [vmem:[%s0 + $0x68] sm:$0xff]
    %v39 = vld [vmem:[%s0 + $0x70] sm:$0xff]
    %v40 = vld [vmem:[%s0 + $0x78] sm:$0xff]
    %vm41 = vcmask 261120
    %v43 = vsel %vm41, %v23, 0
    %v46 = vsel %vm41, %v24, 0
    %v49 = vsel %vm41, %v25, 0
    %v52 = vsel %vm41, %v26, 0
    %v55 = vsel %vm41, %v27, 0
    %v58 = vsel %vm41, %v28, 0
    %v61 = vsel %vm41, %v29, 0
    %v64 = vsel %vm41, %v30, 0
    %v67 = vsel %vm41, %v31, 0
    %v70 = vsel %vm41, %v32, 0
    %v73 = vsel %vm41, %v33, 0
    %v76 = vsel %vm41, %v34, 0
    %v79 = vsel %vm41, %v35, 0
    %v82 = vsel %vm41, %v36, 0
    %v85 = vsel %vm41, %v37, 0
    %v88 = vsel %vm41, %v38, 0
    %v91 = vsel %vm41, %v39, 0
    %v94 = vsel %vm41, %v40, 0
    %96 = vmatprep.subr.mxu0 0.0
    %97 = vmatpush1.xpose.msra.mxu0 %v94
    %98 = vmatprep.subr.mxu0 0.0
    %99 = vmatpush1.xpose.msra.mxu0 %v91
    %100 = vmatprep.subr.mxu0 0.0
    %101 = vmatpush1.xpose.msra.mxu0 %v88
    %102 = vmatprep.subr.mxu0 0.0
    %103 = vmatpush1.xpose.msra.mxu0 %v85
    %104 = vmatprep.subr.mxu0 0.0
    %105 = vmatpush1.xpose.msra.mxu0 %v82
    %106 = vmatprep.subr.mxu0 0.0
    %107 = vmatpush1.xpose.msra.mxu0 %v79
    %108 = vmatprep.subr.mxu0 0.0
    %109 = vmatpush1.xpose.msra.mxu0 %v76
    %110 = vmatprep.subr.mxu0 0.0
    %111 = vmatpush1.xpose.msra.mxu0 %v73
    %112 = vmatprep.subr.mxu0 0.0
    %113 = vmatpush1.xpose.msra.mxu0 %v70
    %114 = vmatprep.subr.mxu0 0.0
    %115 = vmatpush1.xpose.msra.mxu0 %v67
    %116 = vmatprep.subr.mxu0 0.0
    %117 = vmatpush1.xpose.msra.mxu0 %v64
    %118 = vmatprep.subr.mxu0 0.0
    %119 = vmatpush1.xpose.msra.mxu0 %v61
    %120 = vmatprep.subr.mxu0 0.0
    %121 = vmatpush1.xpose.msra.mxu0 %v58
    %122 = vmatprep.subr.mxu0 0.0
    %123 = vmatpush1.xpose.msra.mxu0 %v55
    %124 = vmatprep.subr.mxu0 0.0
    %125 = vmatpush1.xpose.msra.mxu0 %v52
    %126 = vmatprep.subr.mxu0 0.0
    %127 = vmatpush1.xpose.msra.mxu0 %v49
    %128 = vmatprep.subr.mxu0 0.0
    %129 = vmatpush2.xpose.msra.mxu0 0.0
    %130 = vmatprep.subr.mxu0 0.0
    %131 = vmatpush2.xpose.msra.mxu0 0.0
    %132 = vmatprep.subr.mxu0 0.0
    %133 = vmatpush2.xpose.msra.mxu0 0.0
    %134 = vmatprep.subr.mxu0 0.0
    %135 = vmatpush2.xpose.msra.mxu0 0.0
    %136 = vmatprep.subr.mxu0 0.0
    %137 = vmatpush2.xpose.msra.mxu0 0.0
    %138 = vmatprep.subr.mxu0 0.0
    %139 = vmatpush2.xpose.msra.mxu0 0.0
    %140 = vmatprep.subr.mxu0 0.0
    %141 = vmatpush2.xpose.msra.mxu0 0.0
    %142 = vmatprep.subr.mxu0 0.0
    %143 = vmatpush2.xpose.msra.mxu0 0.0
    %144 = vmatprep.subr.mxu0 0.0
    %145 = vmatpush2.xpose.msra.mxu0 0.0
    %146 = vmatprep.subr.mxu0 0.0
    %147 = vmatpush2.xpose.msra.mxu0 0.0
    %148 = vmatprep.subr.mxu0 0.0
    %149 = vmatpush2.xpose.msra.mxu0 0.0
    %150 = vmatprep.subr.mxu0 0.0
    %151 = vmatpush2.xpose.msra.mxu0 0.0
    %152 = vmatprep.subr.mxu0 0.0
    %153 = vmatpush2.xpose.msra.mxu0 0.0
    %154 = vmatprep.subr.mxu0 0.0
    %155 = vmatpush2.xpose.msra.mxu0 0.0
    %156 = vmatprep.subr.mxu0 0.0
    %157 = vmatpush2.xpose.msra.mxu0 0.0
    %158 = vmatprep.subr.mxu0 0.0
    %159 = vmatpush2.xpose.msra.mxu0 0.0
    %160 = vmatprep.mubr.f32.mxu0 0.0
    %161 = vmatmul.mubr.f32.gmra.mxu0 %v43
    %v162 = vpop.f32.mrf.mxu0
    %v163 = vadd.f32 0.0, %v162
    %v164 = vpop.f32.mrf.mxu0
    %165 = vmatprep.mubr.f32.mxu0 0.0
    %166 = vmatmul.mubr.f32.gmra.mxu0 %v46
    %v167 = vpop.f32.mrf.mxu0
    %v168 = vadd.f32 0.0, %v167
    %v169 = vpop.f32.mrf.mxu0
    %170 = vdwg.mxu0
    %v171 = vmul.f32 %v163, 2.0
    %v172 = vmul.f32 %v168, 2.0
    %v173 = vsub.f32 2.0, %v171
    %v174 = vsub.f32 2.0, %v172
    %v175 = vmax.f32 %v173, 0.0
    %v176 = vmax.f32 %v174, 0.0
    %v177 = vmax.f32 %v175, 1e-24
    %v178 = vmax.f32 %v176, 1e-24
    %v179 = vrsqrt.pop %v177
    %v180 = vrsqrt.pop %v178
    %v181 = vmul.f32 %v175, %v179
    %v182 = vmul.f32 %v176, %v180
    %s183 = scalar_lea.vmem %s1, %s21
    %v184 = vld [vmem:[%s183] sm:$0xff]
    %v185 = vld [vmem:[%s183 + $0x8] sm:$0xff]
    %v186 = vld [vmem:[%s2] sm:$0x1]
    %v187 = vlaneseq
    %v188 = vshrl.u32 %v187, 7
    %v189 = vadd.s32 %v188, 8
    %v190 = vstv %s21
    %v191 = vadd.s32 %v190, %v188
    %v192 = vadd.s32 %v190, %v189
    %v193 = vlaneseq
    %v194 = vand.u32 %v193, 127
    %vm195 = vcmp.lt.s32.totalorder %v191, 16
    %vm196 = vcmp.lt.s32.totalorder %v192, 16
    %vm197 = vcmp.lt.s32.totalorder %v194, 16
    %v198 = vsel %vm195, 1, 0
    %v199 = vsel %vm196, 1, 0
    %vm200 = vcmp.eq.s32.totalorder %v198, 1
    %vm201 = vcmp.eq.s32.totalorder %v199, 1
    %v202 = vsel %vm197, 1, 0
    %vm203 = vcmp.eq.s32.totalorder %v202, 1
    %vm204 = vmand %vm200, %vm203
    %vm205 = vmand %vm201, %vm203
    %206 = vset.pattern.permute.xlu0 0
    %207 = vperm.xlu0 %206, %v184
    %v208 = vpop.permute.xlu0 %207
    %209 = vset.pattern.permute.xlu0 0
    %210 = vperm.xlu0 %209, %v185
    %v211 = vpop.permute.xlu0 %210
    %v212 = vlaneseq
    %v213 = vshrl.u32 %v212, 7
    %v214 = vsub.s32 0, %v213
    %v215 = vrot.slane %v186, %v214
    %vm216 = vcmp.ne.s32.totalorder %v208, %v215
    %vm217 = vcmp.ne.s32.totalorder %v211, %v215
    %vm218 = vmand %vm216, %vm204
    %vm219 = vmand %vm217, %vm205
    %v220 = vsel %vm218, %v181, -1e+09
    %v221 = vsel %vm219, %v182, -1e+09
    %222 = vst [vmem:[#allocation2] sm:$0xff] %v220
    %223 = vst [vmem:[#allocation2 + $0x8] sm:$0xff] %v221
    %224 = vmatprep.subr.mxu0 0.0
    %225 = vmatpush1.xpose.msra.mxu0 0.0
    %226 = vmatprep.subr.mxu0 0.0
    %227 = vmatpush1.xpose.msra.mxu0 0.0
    %228 = vmatprep.subr.mxu0 0.0
    %229 = vmatpush1.xpose.msra.mxu0 0.0
    %230 = vmatprep.subr.mxu0 0.0
    %231 = vmatpush1.xpose.msra.mxu0 0.0
    %232 = vmatprep.subr.mxu0 0.0
    %233 = vmatpush1.xpose.msra.mxu0 0.0
    %234 = vmatprep.subr.mxu0 0.0
    %235 = vmatpush1.xpose.msra.mxu0 0.0
    %236 = vmatprep.subr.mxu0 0.0
    %237 = vmatpush1.xpose.msra.mxu0 0.0
    %238 = vmatprep.subr.mxu0 0.0
    %239 = vmatpush1.xpose.msra.mxu0 0.0
    %240 = vmatprep.subr.mxu0 0.0
    %241 = vmatpush1.xpose.msra.mxu0 0.0
    %242 = vmatprep.subr.mxu0 0.0
    %243 = vmatpush1.xpose.msra.mxu0 0.0
    %244 = vmatprep.subr.mxu0 0.0
    %245 = vmatpush1.xpose.msra.mxu0 0.0
    %246 = vmatprep.subr.mxu0 0.0
    %247 = vmatpush1.xpose.msra.mxu0 0.0
    %248 = vmatprep.subr.mxu0 0.0
    %249 = vmatpush1.xpose.msra.mxu0 0.0
    %250 = vmatprep.subr.mxu0 0.0
    %251 = vmatpush1.xpose.msra.mxu0 0.0
    %252 = vmatprep.subr.mxu0 0.0
    %253 = vmatpush1.xpose.msra.mxu0 %v46
    %254 = vmatprep.subr.mxu0 0.0
    %255 = vmatpush1.xpose.msra.mxu0 %v43
    %256 = vmatprep.subr.mxu0 0.0
    %257 = vmatpush2.xpose.msra.mxu0 0.0
    %258 = vmatprep.subr.mxu0 0.0
    %259 = vmatpush2.xpose.msra.mxu0 0.0
    %260 = vmatprep.subr.mxu0 0.0
    %261 = vmatpush2.xpose.msra.mxu0 0.0
    %262 = vmatprep.subr.mxu0 0.0
    %263 = vmatpush2.xpose.msra.mxu0 0.0
    %264 = vmatprep.subr.mxu0 0.0
    %265 = vmatpush2.xpose.msra.mxu0 0.0
    %266 = vmatprep.subr.mxu0 0.0
    %267 = vmatpush2.xpose.msra.mxu0 0.0
    %268 = vmatprep.subr.mxu0 0.0
    %269 = vmatpush2.xpose.msra.mxu0 0.0
    %270 = vmatprep.subr.mxu0 0.0
    %271 = vmatpush2.xpose.msra.mxu0 0.0
    %272 = vmatprep.subr.mxu0 0.0
    %273 = vmatpush2.xpose.msra.mxu0 0.0
    %274 = vmatprep.subr.mxu0 0.0
    %275 = vmatpush2.xpose.msra.mxu0 0.0
    %276 = vmatprep.subr.mxu0 0.0
    %277 = vmatpush2.xpose.msra.mxu0 0.0
    %278 = vmatprep.subr.mxu0 0.0
    %279 = vmatpush2.xpose.msra.mxu0 0.0
    %280 = vmatprep.subr.mxu0 0.0
    %281 = vmatpush2.xpose.msra.mxu0 0.0
    %282 = vmatprep.subr.mxu0 0.0
    %283 = vmatpush2.xpose.msra.mxu0 0.0
    %284 = vmatprep.subr.mxu0 0.0
    %285 = vmatpush2.xpose.msra.mxu0 0.0
    %286 = vmatprep.subr.mxu0 0.0
    %287 = vmatpush2.xpose.msra.mxu0 0.0
    %288 = vmatprep.mubr.f32.mxu0 0.0
    %289 = vmatmul.mubr.f32.gmra.mxu0 %v49
    %v290 = vpop.f32.mrf.mxu0
    %v291 = vadd.f32 0.0, %v290
    %v292 = vpop.f32.mrf.mxu0
    %293 = vmatprep.mubr.f32.mxu0 0.0
    %294 = vmatmul.mubr.f32.gmra.mxu0 %v52
    %v295 = vpop.f32.mrf.mxu0
    %v296 = vadd.f32 0.0, %v295
    %v297 = vpop.f32.mrf.mxu0
    %298 = vmatprep.mubr.f32.mxu0 0.0
    %299 = vmatmul.mubr.f32.gmra.mxu0 %v55
    %v300 = vpop.f32.mrf.mxu0
    %v301 = vadd.f32 0.0, %v300
    %v302 = vpop.f32.mrf.mxu0
    %303 = vmatprep.mubr.f32.mxu0 0.0
    %304 = vmatmul.mubr.f32.gmra.mxu0 %v58
    %v305 = vpop.f32.mrf.mxu0
    %v306 = vadd.f32 0.0, %v305
    %v307 = vpop.f32.mrf.mxu0
    %308 = vmatprep.mubr.f32.mxu0 0.0
    %309 = vmatmul.mubr.f32.gmra.mxu0 %v61
    %v310 = vpop.f32.mrf.mxu0
    %v311 = vadd.f32 0.0, %v310
    %v312 = vpop.f32.mrf.mxu0
    %313 = vmatprep.mubr.f32.mxu0 0.0
    %314 = vmatmul.mubr.f32.gmra.mxu0 %v64
    %v315 = vpop.f32.mrf.mxu0
    %v316 = vadd.f32 0.0, %v315
    %v317 = vpop.f32.mrf.mxu0
    %318 = vmatprep.mubr.f32.mxu0 0.0
    %319 = vmatmul.mubr.f32.gmra.mxu0 %v67
    %v320 = vpop.f32.mrf.mxu0
    %v321 = vadd.f32 0.0, %v320
    %v322 = vpop.f32.mrf.mxu0
    %323 = vmatprep.mubr.f32.mxu0 0.0
    %324 = vmatmul.mubr.f32.gmra.mxu0 %v70
    %v325 = vpop.f32.mrf.mxu0
    %v326 = vadd.f32 0.0, %v325
    %v327 = vpop.f32.mrf.mxu0
    %328 = vmatprep.mubr.f32.mxu0 0.0
    %329 = vmatmul.mubr.f32.gmra.mxu0 %v73
    %v330 = vpop.f32.mrf.mxu0
    %v331 = vadd.f32 0.0, %v330
    %v332 = vpop.f32.mrf.mxu0
    %333 = vmatprep.mubr.f32.mxu0 0.0
    %334 = vmatmul.mubr.f32.gmra.mxu0 %v76
    %v335 = vpop.f32.mrf.mxu0
    %v336 = vadd.f32 0.0, %v335
    %v337 = vpop.f32.mrf.mxu0
    %338 = vmatprep.mubr.f32.mxu0 0.0
    %339 = vmatmul.mubr.f32.gmra.mxu0 %v79
    %v340 = vpop.f32.mrf.mxu0
    %v341 = vadd.f32 0.0, %v340
    %v342 = vpop.f32.mrf.mxu0
    %343 = vmatprep.mubr.f32.mxu0 0.0
    %344 = vmatmul.mubr.f32.gmra.mxu0 %v82
    %v345 = vpop.f32.mrf.mxu0
    %v346 = vadd.f32 0.0, %v345
    %v347 = vpop.f32.mrf.mxu0
    %348 = vmatprep.mubr.f32.mxu0 0.0
    %349 = vmatmul.mubr.f32.gmra.mxu0 %v85
    %v350 = vpop.f32.mrf.mxu0
    %v351 = vadd.f32 0.0, %v350
    %v352 = vpop.f32.mrf.mxu0
    %353 = vmatprep.mubr.f32.mxu0 0.0
    %354 = vmatmul.mubr.f32.gmra.mxu0 %v88
    %v355 = vpop.f32.mrf.mxu0
    %v356 = vadd.f32 0.0, %v355
    %v357 = vpop.f32.mrf.mxu0
    %358 = vmatprep.mubr.f32.mxu0 0.0
    %359 = vmatmul.mubr.f32.gmra.mxu0 %v91
    %v360 = vpop.f32.mrf.mxu0
    %v361 = vadd.f32 0.0, %v360
    %v362 = vpop.f32.mrf.mxu0
    %363 = vmatprep.mubr.f32.mxu0 0.0
    %364 = vmatmul.mubr.f32.gmra.mxu0 %v94
    %v365 = vpop.f32.mrf.mxu0
    %v366 = vadd.f32 0.0, %v365
    %v367 = vpop.f32.mrf.mxu0
    %368 = vdwg.mxu0
    %v369 = vmul.f32 %v291, 2.0
    %v370 = vmul.f32 %v296, 2.0
    %v371 = vmul.f32 %v301, 2.0
    %v372 = vmul.f32 %v306, 2.0
    %v373 = vmul.f32 %v311, 2.0
    %v374 = vmul.f32 %v316, 2.0
    %v375 = vmul.f32 %v321, 2.0
    %v376 = vmul.f32 %v326, 2.0
    %v377 = vmul.f32 %v331, 2.0
    %v378 = vmul.f32 %v336, 2.0
    %v379 = vmul.f32 %v341, 2.0
    %v380 = vmul.f32 %v346, 2.0
    %v381 = vmul.f32 %v351, 2.0
    %v382 = vmul.f32 %v356, 2.0
    %v383 = vmul.f32 %v361, 2.0
    %v384 = vmul.f32 %v366, 2.0
    %v385 = vsub.f32 2.0, %v369
    %v386 = vsub.f32 2.0, %v370
    %v387 = vsub.f32 2.0, %v371
    %v388 = vsub.f32 2.0, %v372
    %v389 = vsub.f32 2.0, %v373
    %v390 = vsub.f32 2.0, %v374
    %v391 = vsub.f32 2.0, %v375
    %v392 = vsub.f32 2.0, %v376
    %v393 = vsub.f32 2.0, %v377
    %v394 = vsub.f32 2.0, %v378
    %v395 = vsub.f32 2.0, %v379
    %v396 = vsub.f32 2.0, %v380
    %v397 = vsub.f32 2.0, %v381
    %v398 = vsub.f32 2.0, %v382
    %v399 = vsub.f32 2.0, %v383
    %v400 = vsub.f32 2.0, %v384
    %v401 = vmax.f32 %v385, 0.0
    %v402 = vmax.f32 %v386, 0.0
    %v403 = vmax.f32 %v387, 0.0
    %v404 = vmax.f32 %v388, 0.0
    %v405 = vmax.f32 %v389, 0.0
    %v406 = vmax.f32 %v390, 0.0
    %v407 = vmax.f32 %v391, 0.0
    %v408 = vmax.f32 %v392, 0.0
    %v409 = vmax.f32 %v393, 0.0
    %v410 = vmax.f32 %v394, 0.0
    %v411 = vmax.f32 %v395, 0.0
    %v412 = vmax.f32 %v396, 0.0
    %v413 = vmax.f32 %v397, 0.0
    %v414 = vmax.f32 %v398, 0.0
    %v415 = vmax.f32 %v399, 0.0
    %v416 = vmax.f32 %v400, 0.0
    %v417 = vmax.f32 %v401, 1e-24
    %v418 = vmax.f32 %v402, 1e-24
    %v419 = vmax.f32 %v403, 1e-24
    %v420 = vmax.f32 %v404, 1e-24
    %v421 = vmax.f32 %v405, 1e-24
    %v422 = vmax.f32 %v406, 1e-24
    %v423 = vmax.f32 %v407, 1e-24
    %v424 = vmax.f32 %v408, 1e-24
    %v425 = vmax.f32 %v409, 1e-24
    %v426 = vmax.f32 %v410, 1e-24
    %v427 = vmax.f32 %v411, 1e-24
    %v428 = vmax.f32 %v412, 1e-24
    %v429 = vmax.f32 %v413, 1e-24
    %v430 = vmax.f32 %v414, 1e-24
    %v431 = vmax.f32 %v415, 1e-24
    %v432 = vmax.f32 %v416, 1e-24
    %v433 = vrsqrt.pop %v417
    %v434 = vrsqrt.pop %v418
    %v435 = vrsqrt.pop %v419
    %v436 = vrsqrt.pop %v420
    %v437 = vrsqrt.pop %v421
    %v438 = vrsqrt.pop %v422
    %v439 = vrsqrt.pop %v423
    %v440 = vrsqrt.pop %v424
    %v441 = vrsqrt.pop %v425
    %v442 = vrsqrt.pop %v426
    %v443 = vrsqrt.pop %v427
    %v444 = vrsqrt.pop %v428
    %v445 = vrsqrt.pop %v429
    %v446 = vrsqrt.pop %v430
    %v447 = vrsqrt.pop %v431
    %v448 = vrsqrt.pop %v432
    %v449 = vmul.f32 %v401, %v433
    %v450 = vmul.f32 %v402, %v434
    %v451 = vmul.f32 %v403, %v435
    %v452 = vmul.f32 %v404, %v436
    %v453 = vmul.f32 %v405, %v437
    %v454 = vmul.f32 %v406, %v438
    %v455 = vmul.f32 %v407, %v439
    %v456 = vmul.f32 %v408, %v440
    %v457 = vmul.f32 %v409, %v441
    %v458 = vmul.f32 %v410, %v442
    %v459 = vmul.f32 %v411, %v443
    %v460 = vmul.f32 %v412, %v444
    %v461 = vmul.f32 %v413, %v445
    %v462 = vmul.f32 %v414, %v446
    %v463 = vmul.f32 %v415, %v447
    %v464 = vmul.f32 %v416, %v448
    %v465 = vld [vmem:[%s1] sm:$0xff]
    %v466 = vld [vmem:[%s1 + $0x8] sm:$0xff]
    %v467 = vld [vmem:[%s1 + $0x10] sm:$0xff]
    %v468 = vld [vmem:[%s1 + $0x18] sm:$0xff]
    %v469 = vld [vmem:[%s1 + $0x20] sm:$0xff]
    %v470 = vld [vmem:[%s1 + $0x28] sm:$0xff]
    %v471 = vld [vmem:[%s1 + $0x30] sm:$0xff]
    %v472 = vld [vmem:[%s1 + $0x38] sm:$0xff]
    %v473 = vld [vmem:[%s1 + $0x40] sm:$0xff]
    %v474 = vld [vmem:[%s1 + $0x48] sm:$0xff]
    %v475 = vld [vmem:[%s1 + $0x50] sm:$0xff]
    %v476 = vld [vmem:[%s1 + $0x58] sm:$0xff]
    %v477 = vld [vmem:[%s1 + $0x60] sm:$0xff]
    %v478 = vld [vmem:[%s1 + $0x68] sm:$0xff]
    %v479 = vld [vmem:[%s1 + $0x70] sm:$0xff]
    %v480 = vld [vmem:[%s1 + $0x78] sm:$0xff]
    %v481 = vld [vmem:[%s3] sm:$0x1]
    %v482 = vadd.s32 %v188, 16
    %v483 = vadd.s32 %v188, 24
    %v484 = vadd.s32 %v188, 32
    %v485 = vadd.s32 %v188, 40
    %v486 = vadd.s32 %v188, 48
    %v487 = vadd.s32 %v188, 56
    %v488 = vadd.s32 %v188, 64
    %v489 = vadd.s32 %v188, 72
    %v490 = vadd.s32 %v188, 80
    %v491 = vadd.s32 %v188, 88
    %v492 = vadd.s32 %v188, 96
    %v493 = vadd.s32 %v188, 104
    %v494 = vadd.s32 %v188, 112
    %v495 = vadd.s32 %v188, 120
    %v496 = vadd.s32 %v190, %v194
    %vm497 = vcmp.lt.s32.totalorder %v188, 16
    %vm498 = vcmp.lt.s32.totalorder %v189, 16
    %vm499 = vcmp.lt.s32.totalorder %v482, 16
    %vm500 = vcmp.lt.s32.totalorder %v483, 16
    %vm501 = vcmp.lt.s32.totalorder %v484, 16
    %vm502 = vcmp.lt.s32.totalorder %v485, 16
    %vm503 = vcmp.lt.s32.totalorder %v486, 16
    %vm504 = vcmp.lt.s32.totalorder %v487, 16
    %vm505 = vcmp.lt.s32.totalorder %v488, 16
    %vm506 = vcmp.lt.s32.totalorder %v489, 16
    %vm507 = vcmp.lt.s32.totalorder %v490, 16
    %vm508 = vcmp.lt.s32.totalorder %v491, 16
    %vm509 = vcmp.lt.s32.totalorder %v492, 16
    %vm510 = vcmp.lt.s32.totalorder %v493, 16
    %vm511 = vcmp.lt.s32.totalorder %v494, 16
    %vm512 = vcmp.lt.s32.totalorder %v495, 16
    %vm513 = vcmp.lt.s32.totalorder %v496, 16
    %v514 = vsel %vm497, 1, 0
    %v515 = vsel %vm498, 1, 0
    %v516 = vsel %vm499, 1, 0
    %v517 = vsel %vm500, 1, 0
    %v518 = vsel %vm501, 1, 0
    %v519 = vsel %vm502, 1, 0
    %v520 = vsel %vm503, 1, 0
    %v521 = vsel %vm504, 1, 0
    %v522 = vsel %vm505, 1, 0
    %v523 = vsel %vm506, 1, 0
    %v524 = vsel %vm507, 1, 0
    %v525 = vsel %vm508, 1, 0
    %v526 = vsel %vm509, 1, 0
    %v527 = vsel %vm510, 1, 0
    %v528 = vsel %vm511, 1, 0
    %v529 = vsel %vm512, 1, 0
    %vm530 = vcmp.eq.s32.totalorder %v514, 1
    %vm531 = vcmp.eq.s32.totalorder %v515, 1
    %vm532 = vcmp.eq.s32.totalorder %v516, 1
    %vm533 = vcmp.eq.s32.totalorder %v517, 1
    %vm534 = vcmp.eq.s32.totalorder %v518, 1
    %vm535 = vcmp.eq.s32.totalorder %v519, 1
    %vm536 = vcmp.eq.s32.totalorder %v520, 1
    %vm537 = vcmp.eq.s32.totalorder %v521, 1
    %vm538 = vcmp.eq.s32.totalorder %v522, 1
    %vm539 = vcmp.eq.s32.totalorder %v523, 1
    %vm540 = vcmp.eq.s32.totalorder %v524, 1
    %vm541 = vcmp.eq.s32.totalorder %v525, 1
    %vm542 = vcmp.eq.s32.totalorder %v526, 1
    %vm543 = vcmp.eq.s32.totalorder %v527, 1
    %vm544 = vcmp.eq.s32.totalorder %v528, 1
    %vm545 = vcmp.eq.s32.totalorder %v529, 1
    %v546 = vsel %vm513, 1, 0
    %vm547 = vcmp.eq.s32.totalorder %v546, 1
    %vm548 = vmand %vm530, %vm547
    %vm549 = vmand %vm531, %vm547
    %vm550 = vmand %vm532, %vm547
    %vm551 = vmand %vm533, %vm547
    %vm552 = vmand %vm534, %vm547
    %vm553 = vmand %vm535, %vm547
    %vm554 = vmand %vm536, %vm547
    %vm555 = vmand %vm537, %vm547
    %vm556 = vmand %vm538, %vm547
    %vm557 = vmand %vm539, %vm547
    %vm558 = vmand %vm540, %vm547
    %vm559 = vmand %vm541, %vm547
    %vm560 = vmand %vm542, %vm547
    %vm561 = vmand %vm543, %vm547
    %vm562 = vmand %vm544, %vm547
    %vm563 = vmand %vm545, %vm547
    %564 = vset.pattern.permute.xlu0 0
    %565 = vperm.xlu0 %564, %v465
    %v566 = vpop.permute.xlu0 %565
    %567 = vset.pattern.permute.xlu0 0
    %568 = vperm.xlu0 %567, %v466
    %v569 = vpop.permute.xlu0 %568
    %570 = vset.pattern.permute.xlu0 0
    %571 = vperm.xlu0 %570, %v467
    %v572 = vpop.permute.xlu0 %571
    %573 = vset.pattern.permute.xlu0 0
    %574 = vperm.xlu0 %573, %v468
    %v575 = vpop.permute.xlu0 %574
    %576 = vset.pattern.permute.xlu0 0
    %577 = vperm.xlu0 %576, %v469
    %v578 = vpop.permute.xlu0 %577
    %579 = vset.pattern.permute.xlu0 0
    %580 = vperm.xlu0 %579, %v470
    %v581 = vpop.permute.xlu0 %580
    %582 = vset.pattern.permute.xlu0 0
    %583 = vperm.xlu0 %582, %v471
    %v584 = vpop.permute.xlu0 %583
    %585 = vset.pattern.permute.xlu0 0
    %586 = vperm.xlu0 %585, %v472
    %v587 = vpop.permute.xlu0 %586
    %588 = vset.pattern.permute.xlu0 0
    %589 = vperm.xlu0 %588, %v473
    %v590 = vpop.permute.xlu0 %589
    %591 = vset.pattern.permute.xlu0 0
    %592 = vperm.xlu0 %591, %v474
    %v593 = vpop.permute.xlu0 %592
    %594 = vset.pattern.permute.xlu0 0
    %595 = vperm.xlu0 %594, %v475
    %v596 = vpop.permute.xlu0 %595
    %597 = vset.pattern.permute.xlu0 0
    %598 = vperm.xlu0 %597, %v476
    %v599 = vpop.permute.xlu0 %598
    %600 = vset.pattern.permute.xlu0 0
    %601 = vperm.xlu0 %600, %v477
    %v602 = vpop.permute.xlu0 %601
    %603 = vset.pattern.permute.xlu0 0
    %604 = vperm.xlu0 %603, %v478
    %v605 = vpop.permute.xlu0 %604
    %606 = vset.pattern.permute.xlu0 0
    %607 = vperm.xlu0 %606, %v479
    %v608 = vpop.permute.xlu0 %607
    %609 = vset.pattern.permute.xlu0 0
    %610 = vperm.xlu0 %609, %v480
    %v611 = vpop.permute.xlu0 %610
    %v612 = vlaneseq
    %v613 = vshrl.u32 %v612, 7
    %v614 = vsub.s32 0, %v613
    %v615 = vrot.slane %v481, %v614
    %vm616 = vcmp.eq.s32.totalorder %v566, %v615
    %vm617 = vcmp.eq.s32.totalorder %v569, %v615
    %vm618 = vcmp.eq.s32.totalorder %v572, %v615
    %vm619 = vcmp.eq.s32.totalorder %v575, %v615
    %vm620 = vcmp.eq.s32.totalorder %v578, %v615
    %vm621 = vcmp.eq.s32.totalorder %v581, %v615
    %vm622 = vcmp.eq.s32.totalorder %v584, %v615
    %vm623 = vcmp.eq.s32.totalorder %v587, %v615
    %vm624 = vcmp.eq.s32.totalorder %v590, %v615
    %vm625 = vcmp.eq.s32.totalorder %v593, %v615
    %vm626 = vcmp.eq.s32.totalorder %v596, %v615
    %vm627 = vcmp.eq.s32.totalorder %v599, %v615
    %vm628 = vcmp.eq.s32.totalorder %v602, %v615
    %vm629 = vcmp.eq.s32.totalorder %v605, %v615
    %vm630 = vcmp.eq.s32.totalorder %v608, %v615
    %vm631 = vcmp.eq.s32.totalorder %v611, %v615
    %vm632 = vcmp.ne.s32.totalorder %v188, %v496
    %vm633 = vcmp.ne.s32.totalorder %v189, %v496
    %vm634 = vcmp.ne.s32.totalorder %v482, %v496
    %vm635 = vcmp.ne.s32.totalorder %v483, %v496
    %vm636 = vcmp.ne.s32.totalorder %v484, %v496
    %vm637 = vcmp.ne.s32.totalorder %v485, %v496
    %vm638 = vcmp.ne.s32.totalorder %v486, %v496
    %vm639 = vcmp.ne.s32.totalorder %v487, %v496
    %vm640 = vcmp.ne.s32.totalorder %v488, %v496
    %vm641 = vcmp.ne.s32.totalorder %v489, %v496
    %vm642 = vcmp.ne.s32.totalorder %v490, %v496
    %vm643 = vcmp.ne.s32.totalorder %v491, %v496
    %vm644 = vcmp.ne.s32.totalorder %v492, %v496
    %vm645 = vcmp.ne.s32.totalorder %v493, %v496
    %vm646 = vcmp.ne.s32.totalorder %v494, %v496
    %vm647 = vcmp.ne.s32.totalorder %v495, %v496
    %vm648 = vmand %vm616, %vm632
    %vm649 = vmand %vm617, %vm633
    %vm650 = vmand %vm618, %vm634
    %vm651 = vmand %vm619, %vm635
    %vm652 = vmand %vm620, %vm636
    %vm653 = vmand %vm621, %vm637
    %vm654 = vmand %vm622, %vm638
    %vm655 = vmand %vm623, %vm639
    %vm656 = vmand %vm624, %vm640
    %vm657 = vmand %vm625, %vm641
    %vm658 = vmand %vm626, %vm642
    %vm659 = vmand %vm627, %vm643
    %vm660 = vmand %vm628, %vm644
    %vm661 = vmand %vm629, %vm645
    %vm662 = vmand %vm630, %vm646
    %vm663 = vmand %vm631, %vm647
    %vm664 = vmand %vm648, %vm548
    %vm665 = vmand %vm649, %vm549
    %vm666 = vmand %vm650, %vm550
    %vm667 = vmand %vm651, %vm551
    %vm668 = vmand %vm652, %vm552
    %vm669 = vmand %vm653, %vm553
    %vm670 = vmand %vm654, %vm554
    %vm671 = vmand %vm655, %vm555
    %vm672 = vmand %vm656, %vm556
    %vm673 = vmand %vm657, %vm557
    %vm674 = vmand %vm658, %vm558
    %vm675 = vmand %vm659, %vm559
    %vm676 = vmand %vm660, %vm560
    %vm677 = vmand %vm661, %vm561
    %vm678 = vmand %vm662, %vm562
    %vm679 = vmand %vm663, %vm563
    %v680 = vsel %vm664, %v449, 1e+09
    %v681 = vsel %vm665, %v450, 1e+09
    %v682 = vsel %vm666, %v451, 1e+09
    %v683 = vsel %vm667, %v452, 1e+09
    %v684 = vsel %vm668, %v453, 1e+09
    %v685 = vsel %vm669, %v454, 1e+09
    %v686 = vsel %vm670, %v455, 1e+09
    %v687 = vsel %vm671, %v456, 1e+09
    %v688 = vsel %vm672, %v457, 1e+09
    %v689 = vsel %vm673, %v458, 1e+09
    %v690 = vsel %vm674, %v459, 1e+09
    %v691 = vsel %vm675, %v460, 1e+09
    %v692 = vsel %vm676, %v461, 1e+09
    %v693 = vsel %vm677, %v462, 1e+09
    %v694 = vsel %vm678, %v463, 1e+09
    %v695 = vsel %vm679, %v464, 1e+09
    %vm696 = vcmask 130048
    %697 = vst.msk [vmem:[#allocation3] sm:$0xff] %vm696, %v680
    %698 = vst.msk [vmem:[#allocation3 + $0x8] sm:$0xff] %vm696, %v681
    %699 = vst.msk [vmem:[#allocation3 + $0x10] sm:$0xff] %vm696, %v682
    %700 = vst.msk [vmem:[#allocation3 + $0x18] sm:$0xff] %vm696, %v683
    %701 = vst.msk [vmem:[#allocation3 + $0x20] sm:$0xff] %vm696, %v684
    %702 = vst.msk [vmem:[#allocation3 + $0x28] sm:$0xff] %vm696, %v685
    %703 = vst.msk [vmem:[#allocation3 + $0x30] sm:$0xff] %vm696, %v686
    %704 = vst.msk [vmem:[#allocation3 + $0x38] sm:$0xff] %vm696, %v687
    %705 = vst.msk [vmem:[#allocation3 + $0x40] sm:$0xff] %vm696, %v688
    %706 = vst.msk [vmem:[#allocation3 + $0x48] sm:$0xff] %vm696, %v689
    %707 = vst.msk [vmem:[#allocation3 + $0x50] sm:$0xff] %vm696, %v690
    %708 = vst.msk [vmem:[#allocation3 + $0x58] sm:$0xff] %vm696, %v691
    %709 = vst.msk [vmem:[#allocation3 + $0x60] sm:$0xff] %vm696, %v692
    %710 = vst.msk [vmem:[#allocation3 + $0x68] sm:$0xff] %vm696, %v693
    %711 = vst.msk [vmem:[#allocation3 + $0x70] sm:$0xff] %vm696, %v694
    %712 = vst.msk [vmem:[#allocation3 + $0x78] sm:$0xff] %vm696, %v695
    %713 = vst [vmem:[#allocation4] sm:$0xff] 0.0
    %714 = vst [vmem:[#allocation4 + $0x8] sm:$0xff] 0.0
    %715 = vst [vmem:[#allocation4 + $0x10] sm:$0xff] 0.0
    %716 = vst [vmem:[#allocation4 + $0x18] sm:$0xff] 0.0
    %717 = vst [vmem:[#allocation4 + $0x20] sm:$0xff] 0.0
    %718 = vst [vmem:[#allocation4 + $0x28] sm:$0xff] 0.0
    %719 = vst [vmem:[#allocation4 + $0x30] sm:$0xff] 0.0
    %720 = vst [vmem:[#allocation4 + $0x38] sm:$0xff] 0.0
    %721 = vst [vmem:[#allocation4 + $0x40] sm:$0xff] 0.0
    %722 = vst [vmem:[#allocation4 + $0x48] sm:$0xff] 0.0
    %723 = vst [vmem:[#allocation4 + $0x50] sm:$0xff] 0.0
    %724 = vst [vmem:[#allocation4 + $0x58] sm:$0xff] 0.0
    %725 = vst [vmem:[#allocation4 + $0x60] sm:$0xff] 0.0
    %726 = vst [vmem:[#allocation4 + $0x68] sm:$0xff] 0.0
    %727 = vst [vmem:[#allocation4 + $0x70] sm:$0xff] 0.0
    %728 = vst [vmem:[#allocation4 + $0x78] sm:$0xff] 0.0
    %729 = vst [vmem:[#allocation5] sm:$0xff] 0.0
    %730 = vst [vmem:[#allocation5 + $0x8] sm:$0xff] 0.0
    %731 = vst [vmem:[#allocation5 + $0x10] sm:$0xff] 0.0
    %732 = vst [vmem:[#allocation5 + $0x18] sm:$0xff] 0.0
    %733 = vst [vmem:[#allocation5 + $0x20] sm:$0xff] 0.0
    %734 = vst [vmem:[#allocation5 + $0x28] sm:$0xff] 0.0
    %735 = vst [vmem:[#allocation5 + $0x30] sm:$0xff] 0.0
    %736 = vst [vmem:[#allocation5 + $0x38] sm:$0xff] 0.0
    %737 = vst [vmem:[#allocation5 + $0x40] sm:$0xff] 0.0
    %738 = vst [vmem:[#allocation5 + $0x48] sm:$0xff] 0.0
    %739 = vst [vmem:[#allocation5 + $0x50] sm:$0xff] 0.0
    %740 = vst [vmem:[#allocation5 + $0x58] sm:$0xff] 0.0
    %741 = vst [vmem:[#allocation5 + $0x60] sm:$0xff] 0.0
    %742 = vst [vmem:[#allocation5 + $0x68] sm:$0xff] 0.0
    %743 = vst [vmem:[#allocation5 + $0x70] sm:$0xff] 0.0
    %744 = vst [vmem:[#allocation5 + $0x78] sm:$0xff] 0.0
    loop: start=0, step=1, limit=16
    $region18: #{tpu_custom_call.1} parent=1 // loop_pre_header
      _
    $region19: #{tpu_custom_call.1} parent=1 // loop_header
      %s746 = sphi 0, %s750
      %p747 = scmp.ge.s32.totalorder %s746, 16
    $region20: #{tpu_custom_call.1} parent=1 // loop_header_branch
      %749 = sbr.rel (%p747) target = $region24
    $region21: #{tpu_custom_call.1} parent=1 // loop_body
      %s751 = smul.u32 %s746, 8
      %s752 = scalar_lea.vmem [#allocation3], %s751
      %v753 = vld [vmem:[%s752] sm:$0xff]
      %v754 = vld [vmem:[#allocation2] sm:$0xff]
      %v755 = vld [vmem:[#allocation2 + $0x8] sm:$0xff]
      %v756 = vlaneseq
      %v757 = vshrl.u32 %v756, 7
      %v758 = vsub.s32 0, %v757
      %v759 = vrot.slane %v753, %v758
      %761 = vbcast.lane.b32.xlu0 %v759, 256
      %v762 = vpop.permute.xlu0 %761
      %s764 = sor.u32 256, 8
      %765 = vbcast.lane.b32.xlu0 %v759, %s764
      %v766 = vpop.permute.xlu0 %765
      %v767 = vlaneseq
      %v768 = vshrl.u32 %v767, 7
      %v769 = vsub.s32 1, %v768
      %v770 = vrot.slane %v753, %v769
      %772 = vbcast.lane.b32.xlu0 %v770, 256
      %v773 = vpop.permute.xlu0 %772
      %s775 = sor.u32 256, 8
      %776 = vbcast.lane.b32.xlu0 %v770, %s775
      %v777 = vpop.permute.xlu0 %776
      %v778 = vlaneseq
      %v779 = vshrl.u32 %v778, 7
      %v780 = vsub.s32 2, %v779
      %v781 = vrot.slane %v753, %v780
      %783 = vbcast.lane.b32.xlu0 %v781, 256
      %v784 = vpop.permute.xlu0 %783
      %s786 = sor.u32 256, 8
      %787 = vbcast.lane.b32.xlu0 %v781, %s786
      %v788 = vpop.permute.xlu0 %787
      %v789 = vlaneseq
      %v790 = vshrl.u32 %v789, 7
      %v791 = vsub.s32 3, %v790
      %v792 = vrot.slane %v753, %v791
      %794 = vbcast.lane.b32.xlu0 %v792, 256
      %v795 = vpop.permute.xlu0 %794
      %s797 = sor.u32 256, 8
      %798 = vbcast.lane.b32.xlu0 %v792, %s797
      %v799 = vpop.permute.xlu0 %798
      %v800 = vlaneseq
      %v801 = vshrl.u32 %v800, 7
      %v802 = vsub.s32 4, %v801
      %v803 = vrot.slane %v753, %v802
      %805 = vbcast.lane.b32.xlu0 %v803, 256
      %v806 = vpop.permute.xlu0 %805
      %s808 = sor.u32 256, 8
      %809 = vbcast.lane.b32.xlu0 %v803, %s808
      %v810 = vpop.permute.xlu0 %809
      %v811 = vlaneseq
      %v812 = vshrl.u32 %v811, 7
      %v813 = vsub.s32 5, %v812
      %v814 = vrot.slane %v753, %v813
      %816 = vbcast.lane.b32.xlu0 %v814, 256
      %v817 = vpop.permute.xlu0 %816
      %s819 = sor.u32 256, 8
      %820 = vbcast.lane.b32.xlu0 %v814, %s819
      %v821 = vpop.permute.xlu0 %820
      %v822 = vlaneseq
      %v823 = vshrl.u32 %v822, 7
      %v824 = vsub.s32 6, %v823
      %v825 = vrot.slane %v753, %v824
      %827 = vbcast.lane.b32.xlu0 %v825, 256
      %v828 = vpop.permute.xlu0 %827
      %s830 = sor.u32 256, 8
      %831 = vbcast.lane.b32.xlu0 %v825, %s830
      %v832 = vpop.permute.xlu0 %831
      %v833 = vlaneseq
      %v834 = vshrl.u32 %v833, 7
      %v835 = vsub.s32 7, %v834
      %v836 = vrot.slane %v753, %v835
      %838 = vbcast.lane.b32.xlu0 %v836, 256
      %v839 = vpop.permute.xlu0 %838
      %s841 = sor.u32 256, 8
      %842 = vbcast.lane.b32.xlu0 %v836, %s841
      %v843 = vpop.permute.xlu0 %842
      %v844 = vsub.f32 %v754, %v762
      %v845 = vsub.f32 %v755, %v766
      %v846 = vsub.f32 %v754, %v773
      %v847 = vsub.f32 %v755, %v777
      %v848 = vsub.f32 %v754, %v784
      %v849 = vsub.f32 %v755, %v788
      %v850 = vsub.f32 %v754, %v795
      %v851 = vsub.f32 %v755, %v799
      %v852 = vsub.f32 %v754, %v806
      %v853 = vsub.f32 %v755, %v810
      %v854 = vsub.f32 %v754, %v817
      %v855 = vsub.f32 %v755, %v821
      %v856 = vsub.f32 %v754, %v828
      %v857 = vsub.f32 %v755, %v832
      %v858 = vsub.f32 %v754, %v839
      %v859 = vsub.f32 %v755, %v843
      %v860 = vsub.f32 0.1, %v844
      %v861 = vsub.f32 0.1, %v845
      %v862 = vsub.f32 0.1, %v846
      %v863 = vsub.f32 0.1, %v847
      %v864 = vsub.f32 0.1, %v848
      %v865 = vsub.f32 0.1, %v849
      %v866 = vsub.f32 0.1, %v850
      %v867 = vsub.f32 0.1, %v851
      %v868 = vsub.f32 0.1, %v852
      %v869 = vsub.f32 0.1, %v853
      %v870 = vsub.f32 0.1, %v854
      %v871 = vsub.f32 0.1, %v855
      %v872 = vsub.f32 0.1, %v856
      %v873 = vsub.f32 0.1, %v857
      %v874 = vsub.f32 0.1, %v858
      %v875 = vsub.f32 0.1, %v859
      %vm876 = vcmp.gt.f32.partialorder %v844, 0.0
      %vm877 = vcmp.gt.f32.partialorder %v845, 0.0
      %vm878 = vcmp.gt.f32.partialorder %v846, 0.0
      %vm879 = vcmp.gt.f32.partialorder %v847, 0.0
      %vm880 = vcmp.gt.f32.partialorder %v848, 0.0
      %vm881 = vcmp.gt.f32.partialorder %v849, 0.0
      %vm882 = vcmp.gt.f32.partialorder %v850, 0.0
      %vm883 = vcmp.gt.f32.partialorder %v851, 0.0
      %vm884 = vcmp.gt.f32.partialorder %v852, 0.0
      %vm885 = vcmp.gt.f32.partialorder %v853, 0.0
      %vm886 = vcmp.gt.f32.partialorder %v854, 0.0
      %vm887 = vcmp.gt.f32.partialorder %v855, 0.0
      %vm888 = vcmp.gt.f32.partialorder %v856, 0.0
      %vm889 = vcmp.gt.f32.partialorder %v857, 0.0
      %vm890 = vcmp.gt.f32.partialorder %v858, 0.0
      %vm891 = vcmp.gt.f32.partialorder %v859, 0.0
      %vm892 = vcmp.gt.f32.partialorder %v860, 0.0
      %vm893 = vcmp.gt.f32.partialorder %v861, 0.0
      %vm894 = vcmp.gt.f32.partialorder %v862, 0.0
      %vm895 = vcmp.gt.f32.partialorder %v863, 0.0
      %vm896 = vcmp.gt.f32.partialorder %v864, 0.0
      %vm897 = vcmp.gt.f32.partialorder %v865, 0.0
      %vm898 = vcmp.gt.f32.partialorder %v866, 0.0
      %vm899 = vcmp.gt.f32.partialorder %v867, 0.0
      %vm900 = vcmp.gt.f32.partialorder %v868, 0.0
      %vm901 = vcmp.gt.f32.partialorder %v869, 0.0
      %vm902 = vcmp.gt.f32.partialorder %v870, 0.0
      %vm903 = vcmp.gt.f32.partialorder %v871, 0.0
      %vm904 = vcmp.gt.f32.partialorder %v872, 0.0
      %vm905 = vcmp.gt.f32.partialorder %v873, 0.0
      %vm906 = vcmp.gt.f32.partialorder %v874, 0.0
      %vm907 = vcmp.gt.f32.partialorder %v875, 0.0
      %vm908 = vmand %vm876, %vm892
      %vm909 = vmand %vm877, %vm893
      %vm910 = vmand %vm878, %vm894
      %vm911 = vmand %vm879, %vm895
      %vm912 = vmand %vm880, %vm896
      %vm913 = vmand %vm881, %vm897
      %vm914 = vmand %vm882, %vm898
      %vm915 = vmand %vm883, %vm899
      %vm916 = vmand %vm884, %vm900
      %vm917 = vmand %vm885, %vm901
      %vm918 = vmand %vm886, %vm902
      %vm919 = vmand %vm887, %vm903
      %vm920 = vmand %vm888, %vm904
      %vm921 = vmand %vm889, %vm905
      %vm922 = vmand %vm890, %vm906
      %vm923 = vmand %vm891, %vm907
      %v924 = vld [vmem:[#allocation4] sm:$0xff]
      %v925 = vld [vmem:[#allocation4 + $0x8] sm:$0xff]
      %v926 = vld [vmem:[#allocation4 + $0x10] sm:$0xff]
      %v927 = vld [vmem:[#allocation4 + $0x18] sm:$0xff]
      %v928 = vld [vmem:[#allocation4 + $0x20] sm:$0xff]
      %v929 = vld [vmem:[#allocation4 + $0x28] sm:$0xff]
      %v930 = vld [vmem:[#allocation4 + $0x30] sm:$0xff]
      %v931 = vld [vmem:[#allocation4 + $0x38] sm:$0xff]
      %v932 = vld [vmem:[#allocation4 + $0x40] sm:$0xff]
      %v933 = vld [vmem:[#allocation4 + $0x48] sm:$0xff]
      %v934 = vld [vmem:[#allocation4 + $0x50] sm:$0xff]
      %v935 = vld [vmem:[#allocation4 + $0x58] sm:$0xff]
      %v936 = vld [vmem:[#allocation4 + $0x60] sm:$0xff]
      %v937 = vld [vmem:[#allocation4 + $0x68] sm:$0xff]
      %v938 = vld [vmem:[#allocation4 + $0x70] sm:$0xff]
      %v939 = vld [vmem:[#allocation4 + $0x78] sm:$0xff]
      %v940 = vsel %vm908, %v860, 0.0
      %v941 = vsel %vm909, %v861, 0.0
      %v942 = vsel %vm910, %v862, 0.0
      %v943 = vsel %vm911, %v863, 0.0
      %v944 = vsel %vm912, %v864, 0.0
      %v945 = vsel %vm913, %v865, 0.0
      %v946 = vsel %vm914, %v866, 0.0
      %v947 = vsel %vm915, %v867, 0.0
      %v948 = vsel %vm916, %v868, 0.0
      %v949 = vsel %vm917, %v869, 0.0
      %v950 = vsel %vm918, %v870, 0.0
      %v951 = vsel %vm919, %v871, 0.0
      %v952 = vsel %vm920, %v872, 0.0
      %v953 = vsel %vm921, %v873, 0.0
      %v954 = vsel %vm922, %v874, 0.0
      %v955 = vsel %vm923, %v875, 0.0
      %v956 = vadd.f32 %v924, %v940
      %v957 = vadd.f32 %v925, %v941
      %v958 = vadd.f32 %v926, %v942
      %v959 = vadd.f32 %v927, %v943
      %v960 = vadd.f32 %v928, %v944
      %v961 = vadd.f32 %v929, %v945
      %v962 = vadd.f32 %v930, %v946
      %v963 = vadd.f32 %v931, %v947
      %v964 = vadd.f32 %v932, %v948
      %v965 = vadd.f32 %v933, %v949
      %v966 = vadd.f32 %v934, %v950
      %v967 = vadd.f32 %v935, %v951
      %v968 = vadd.f32 %v936, %v952
      %v969 = vadd.f32 %v937, %v953
      %v970 = vadd.f32 %v938, %v954
      %v971 = vadd.f32 %v939, %v955
      %972 = vst [vmem:[#allocation4] sm:$0xff] %v956
      %973 = vst [vmem:[#allocation4 + $0x8] sm:$0xff] %v957
      %974 = vst [vmem:[#allocation4 + $0x10] sm:$0xff] %v958
      %975 = vst [vmem:[#allocation4 + $0x18] sm:$0xff] %v959
      %976 = vst [vmem:[#allocation4 + $0x20] sm:$0xff] %v960
      %977 = vst [vmem:[#allocation4 + $0x28] sm:$0xff] %v961
      %978 = vst [vmem:[#allocation4 + $0x30] sm:$0xff] %v962
      %979 = vst [vmem:[#allocation4 + $0x38] sm:$0xff] %v963
      %980 = vst [vmem:[#allocation4 + $0x40] sm:$0xff] %v964
      %981 = vst [vmem:[#allocation4 + $0x48] sm:$0xff] %v965
      %982 = vst [vmem:[#allocation4 + $0x50] sm:$0xff] %v966
      %983 = vst [vmem:[#allocation4 + $0x58] sm:$0xff] %v967
      %984 = vst [vmem:[#allocation4 + $0x60] sm:$0xff] %v968
      %985 = vst [vmem:[#allocation4 + $0x68] sm:$0xff] %v969
      %986 = vst [vmem:[#allocation4 + $0x70] sm:$0xff] %v970
      %987 = vst [vmem:[#allocation4 + $0x78] sm:$0xff] %v971
      %v988 = vld [vmem:[#allocation5] sm:$0xff]
      %v989 = vld [vmem:[#allocation5 + $0x8] sm:$0xff]
      %v990 = vld [vmem:[#allocation5 + $0x10] sm:$0xff]
      %v991 = vld [vmem:[#allocation5 + $0x18] sm:$0xff]
      %v992 = vld [vmem:[#allocation5 + $0x20] sm:$0xff]
      %v993 = vld [vmem:[#allocation5 + $0x28] sm:$0xff]
      %v994 = vld [vmem:[#allocation5 + $0x30] sm:$0xff]
      %v995 = vld [vmem:[#allocation5 + $0x38] sm:$0xff]
      %v996 = vld [vmem:[#allocation5 + $0x40] sm:$0xff]
      %v997 = vld [vmem:[#allocation5 + $0x48] sm:$0xff]
      %v998 = vld [vmem:[#allocation5 + $0x50] sm:$0xff]
      %v999 = vld [vmem:[#allocation5 + $0x58] sm:$0xff]
      %v1000 = vld [vmem:[#allocation5 + $0x60] sm:$0xff]
      %v1001 = vld [vmem:[#allocation5 + $0x68] sm:$0xff]
      %v1002 = vld [vmem:[#allocation5 + $0x70] sm:$0xff]
      %v1003 = vld [vmem:[#allocation5 + $0x78] sm:$0xff]
      %v1004 = vsel %vm908, 1.0, 0.0
      %v1005 = vsel %vm909, 1.0, 0.0
      %v1006 = vsel %vm910, 1.0, 0.0
      %v1007 = vsel %vm911, 1.0, 0.0
      %v1008 = vsel %vm912, 1.0, 0.0
      %v1009 = vsel %vm913, 1.0, 0.0
      %v1010 = vsel %vm914, 1.0, 0.0
      %v1011 = vsel %vm915, 1.0, 0.0
      %v1012 = vsel %vm916, 1.0, 0.0
      %v1013 = vsel %vm917, 1.0, 0.0
      %v1014 = vsel %vm918, 1.0, 0.0
      %v1015 = vsel %vm919, 1.0, 0.0
      %v1016 = vsel %vm920, 1.0, 0.0
      %v1017 = vsel %vm921, 1.0, 0.0
      %v1018 = vsel %vm922, 1.0, 0.0
      %v1019 = vsel %vm923, 1.0, 0.0
      %v1020 = vadd.f32 %v988, %v1004
      %v1021 = vadd.f32 %v989, %v1005
      %v1022 = vadd.f32 %v990, %v1006
      %v1023 = vadd.f32 %v991, %v1007
      %v1024 = vadd.f32 %v992, %v1008
      %v1025 = vadd.f32 %v993, %v1009
      %v1026 = vadd.f32 %v994, %v1010
      %v1027 = vadd.f32 %v995, %v1011
      %v1028 = vadd.f32 %v996, %v1012
      %v1029 = vadd.f32 %v997, %v1013
      %v1030 = vadd.f32 %v998, %v1014
      %v1031 = vadd.f32 %v999, %v1015
      %v1032 = vadd.f32 %v1000, %v1016
      %v1033 = vadd.f32 %v1001, %v1017
      %v1034 = vadd.f32 %v1002, %v1018
      %v1035 = vadd.f32 %v1003, %v1019
      %1036 = vst [vmem:[#allocation5] sm:$0xff] %v1020
      %1037 = vst [vmem:[#allocation5 + $0x8] sm:$0xff] %v1021
      %1038 = vst [vmem:[#allocation5 + $0x10] sm:$0xff] %v1022
      %1039 = vst [vmem:[#allocation5 + $0x18] sm:$0xff] %v1023
      %1040 = vst [vmem:[#allocation5 + $0x20] sm:$0xff] %v1024
      %1041 = vst [vmem:[#allocation5 + $0x28] sm:$0xff] %v1025
      %1042 = vst [vmem:[#allocation5 + $0x30] sm:$0xff] %v1026
      %1043 = vst [vmem:[#allocation5 + $0x38] sm:$0xff] %v1027
      %1044 = vst [vmem:[#allocation5 + $0x40] sm:$0xff] %v1028
      %1045 = vst [vmem:[#allocation5 + $0x48] sm:$0xff] %v1029
      %1046 = vst [vmem:[#allocation5 + $0x50] sm:$0xff] %v1030
      %1047 = vst [vmem:[#allocation5 + $0x58] sm:$0xff] %v1031
      %1048 = vst [vmem:[#allocation5 + $0x60] sm:$0xff] %v1032
      %1049 = vst [vmem:[#allocation5 + $0x68] sm:$0xff] %v1033
      %1050 = vst [vmem:[#allocation5 + $0x70] sm:$0xff] %v1034
      %1051 = vst [vmem:[#allocation5 + $0x78] sm:$0xff] %v1035
    $region22: #{tpu_custom_call.1} parent=1 // loop_footer
      %s750 = sadd.s32 1, %s746
    $region23: #{tpu_custom_call.1} parent=1 // loop_footer_branch
      %745 = sbr.rel target = $region19
    $region24: #{tpu_custom_call.1} parent=1 // loop_exit
      _
    %v1052 = vld [vmem:[#allocation4] sm:$0xff]
    %v1053 = vld [vmem:[#allocation4 + $0x8] sm:$0xff]
    %v1054 = vld [vmem:[#allocation4 + $0x10] sm:$0xff]
    %v1055 = vld [vmem:[#allocation4 + $0x18] sm:$0xff]
    %v1056 = vld [vmem:[#allocation4 + $0x20] sm:$0xff]
    %v1057 = vld [vmem:[#allocation4 + $0x28] sm:$0xff]
    %v1058 = vld [vmem:[#allocation4 + $0x30] sm:$0xff]
    %v1059 = vld [vmem:[#allocation4 + $0x38] sm:$0xff]
    %v1060 = vld [vmem:[#allocation4 + $0x40] sm:$0xff]
    %v1061 = vld [vmem:[#allocation4 + $0x48] sm:$0xff]
    %v1062 = vld [vmem:[#allocation4 + $0x50] sm:$0xff]
    %v1063 = vld [vmem:[#allocation4 + $0x58] sm:$0xff]
    %v1064 = vld [vmem:[#allocation4 + $0x60] sm:$0xff]
    %v1065 = vld [vmem:[#allocation4 + $0x68] sm:$0xff]
    %v1066 = vld [vmem:[#allocation4 + $0x70] sm:$0xff]
    %v1067 = vld [vmem:[#allocation4 + $0x78] sm:$0xff]
    %v1068 = vadd.f32 %v1052, %v1054
    %v1069 = vadd.f32 %v1068, %v1056
    %v1070 = vadd.f32 %v1069, %v1058
    %v1071 = vadd.f32 %v1070, %v1060
    %v1072 = vadd.f32 %v1071, %v1062
    %v1073 = vadd.f32 %v1072, %v1064
    %v1074 = vadd.f32 %v1073, %v1066
    %v1075 = vadd.f32 %v1053, %v1055
    %v1076 = vadd.f32 %v1075, %v1057
    %v1077 = vadd.f32 %v1076, %v1059
    %v1078 = vadd.f32 %v1077, %v1061
    %v1079 = vadd.f32 %v1078, %v1063
    %v1080 = vadd.f32 %v1079, %v1065
    %v1081 = vadd.f32 %v1080, %v1067
    %v1082 = vadd.f32 %v1074, %v1081
    %1083 = vadd.xlane.f32.xlu0 %v1082
    %v1084 = vpop.xlane.xlu0 %1083
    %v1085 = vrot.slane %v1084, 4
    %v1086 = vadd.f32 %v1084, %v1085
    %v1087 = vrot.slane %v1086, 2
    %v1088 = vadd.f32 %v1086, %v1087
    %v1089 = vrot.slane %v1088, 1
    %v1090 = vadd.f32 %v1088, %v1089
    %s1091 = vtos %v1090
    %v1092 = vld [vmem:[#allocation5] sm:$0xff]
    %v1093 = vld [vmem:[#allocation5 + $0x8] sm:$0xff]
    %v1094 = vld [vmem:[#allocation5 + $0x10] sm:$0xff]
    %v1095 = vld [vmem:[#allocation5 + $0x18] sm:$0xff]
    %v1096 = vld [vmem:[#allocation5 + $0x20] sm:$0xff]
    %v1097 = vld [vmem:[#allocation5 + $0x28] sm:$0xff]
    %v1098 = vld [vmem:[#allocation5 + $0x30] sm:$0xff]
    %v1099 = vld [vmem:[#allocation5 + $0x38] sm:$0xff]
    %v1100 = vld [vmem:[#allocation5 + $0x40] sm:$0xff]
    %v1101 = vld [vmem:[#allocation5 + $0x48] sm:$0xff]
    %v1102 = vld [vmem:[#allocation5 + $0x50] sm:$0xff]
    %v1103 = vld [vmem:[#allocation5 + $0x58] sm:$0xff]
    %v1104 = vld [vmem:[#allocation5 + $0x60] sm:$0xff]
    %v1105 = vld [vmem:[#allocation5 + $0x68] sm:$0xff]
    %v1106 = vld [vmem:[#allocation5 + $0x70] sm:$0xff]
    %v1107 = vld [vmem:[#allocation5 + $0x78] sm:$0xff]
    %v1108 = vadd.f32 %v1092, %v1094
    %v1109 = vadd.f32 %v1108, %v1096
    %v1110 = vadd.f32 %v1109, %v1098
    %v1111 = vadd.f32 %v1110, %v1100
    %v1112 = vadd.f32 %v1111, %v1102
    %v1113 = vadd.f32 %v1112, %v1104
    %v1114 = vadd.f32 %v1113, %v1106
    %v1115 = vadd.f32 %v1093, %v1095
    %v1116 = vadd.f32 %v1115, %v1097
    %v1117 = vadd.f32 %v1116, %v1099
    %v1118 = vadd.f32 %v1117, %v1101
    %v1119 = vadd.f32 %v1118, %v1103
    %v1120 = vadd.f32 %v1119, %v1105
    %v1121 = vadd.f32 %v1120, %v1107
    %v1122 = vadd.f32 %v1114, %v1121
    %1123 = vadd.xlane.f32.xlu0 %v1122
    %v1124 = vpop.xlane.xlu0 %1123
    %v1125 = vrot.slane %v1124, 4
    %v1126 = vadd.f32 %v1124, %v1125
    %v1127 = vrot.slane %v1126, 2
    %v1128 = vadd.f32 %v1126, %v1127
    %v1129 = vrot.slane %v1128, 1
    %v1130 = vadd.f32 %v1128, %v1129
    %s1131 = vtos %v1130
    %v1132 = vstv %s1091
    %1133 = vst [vmem:[#allocation6] sm:$0x1] %v1132
    %v1134 = vstv %s1131
    %1135 = vst [vmem:[#allocation8] sm:$0x1] %v1134
    // Predicated region
    $region25: #{tpu_custom_call.1} parent=1 // pred_check
      _
    $region26: #{tpu_custom_call.1} parent=1 // pred_check_branch
      %1137 = sbr.rel (0) target = $region28
    $region27: #{tpu_custom_call.1} parent=1 // pred_region
      %s1139 = ssub.s32 16, 16
      %1140 = vsyncadd [#allocation7], %s1139
      %s1142 = sshll.u32 [#allocation6], 4
      %s1143 = int_to_ptr.vmem [resolvable:$true] %s1142
      %1145 = dma.vmem_to_hbm [thread:$0]  %s1143, 16, %s4, [#allocation7]
    $region28: #{tpu_custom_call.1} parent=1 // pred_fallthru
      _
    // Predicated region
    $region29: #{tpu_custom_call.1} parent=1 // pred_check
      _
    $region30: #{tpu_custom_call.1} parent=1 // pred_check_branch
      %1147 = sbr.rel (0) target = $region32
    $region31: #{tpu_custom_call.1} parent=1 // pred_region
      %s1149 = ssub.s32 16, 16
      %1150 = vsyncadd [#allocation9], %s1149
      %s1152 = sshll.u32 [#allocation8], 4
      %s1153 = int_to_ptr.vmem [resolvable:$true] %s1152
      %1155 = dma.vmem_to_hbm [thread:$0]  %s1153, 16, %s5, [#allocation9]
    $region32: #{tpu_custom_call.1} parent=1 // pred_fallthru
      _
    // Predicated region
    $region33: #{tpu_custom_call.1} parent=1 // pred_check
      _
    $region34: #{tpu_custom_call.1} parent=1 // pred_check_branch
      %1157 = sbr.rel (0) target = $region36
    $region35: #{tpu_custom_call.1} parent=1 // pred_region
      %1158 = dma.done [#allocation7], 16
    $region36: #{tpu_custom_call.1} parent=1 // pred_fallthru
      _
    // Predicated region
    $region37: #{tpu_custom_call.1} parent=1 // pred_check
      _
    $region38: #{tpu_custom_call.1} parent=1 // pred_check_branch
      %1160 = sbr.rel (0) target = $region40
    $region39: #{tpu_custom_call.1} parent=1 // pred_region
      %1161 = dma.done [#allocation9], 16
    $region40: #{tpu_custom_call.1} parent=1 // pred_fallthru
      _
    %1162 = vsyncpa [#allocation7], 1
    %1163 = vsyncpa [#allocation9], 1

</llo_original>
